<compile_context>
chip_gen: v7x
topology: tpu7x:2x2x1
jax: 0.10.0
libtpu: 0.0.40
codegen_flags: <defaults>
</compile_context>

<pallas_src>
import functools

import jax
import jax.numpy as jnp
from jax.experimental import pallas as pl
from jax.experimental.pallas import tpu as pltpu


# ----------------------------- Pallas kernel -------------------------------
def seq2seq_kernel(x_enc_ref, mask_ref, x_dec_ref,
                   e_wih_ref, e_whh_ref, e_b_ref,
                   d_wih_ref, d_whh_ref, d_b_ref,
                   lin_w_ref, lin_b_ref,
                   out_ref, pe_ref, pd_ref, hs_ref, *, T, B, H):
    f32 = jnp.float32

    # ---- hoisted fused input projections (off the recurrent critical path):
    #      one lane-dense (T*B, E) @ (E, 4H) matmul per layer, bias
    #      (b_ih + b_hh) folded in, staged to VMEM scratch to bound live
    #      ranges under the static unroll.
    pe_ref[...] = (jnp.dot(x_enc_ref[...], e_wih_ref[...],
                           preferred_element_type=f32) + e_b_ref[...])
    pd_ref[...] = (jnp.dot(x_dec_ref[...], d_wih_ref[...],
                           preferred_element_type=f32) + d_b_ref[...])

    # ---- hoisted mask compare: one compare for all timesteps
    valid_all = mask_ref[...] > 0.5                      # (T*B, 1) bool

    def lstm_step(pre_ref, t, h, c, whh_ref):
        # ONE fused lane-dense recurrent matmul per step on the serial chain.
        pre = pre_ref[pl.ds(t * B, B), :]                # (B, 4H) static slice
        g = pre + jnp.dot(h, whh_ref[...], preferred_element_type=f32)
        sig = jax.nn.sigmoid(g)                          # whole (B, 4H) vreg
        tnh = jnp.tanh(g)
        i_g = sig[:, 0:H]                                # gate order: i,f,g,o
        f_g = sig[:, H:2 * H]
        g_g = tnh[:, 2 * H:3 * H]
        o_g = sig[:, 3 * H:4 * H]
        c_new = f_g * c + i_g * g_g
        h_new = o_g * jnp.tanh(c_new)
        return h_new, c_new

    # ---------------- encoder: masked LSTM (pack_padded_sequence emulation) -
    h = jnp.zeros((B, H), f32)
    c = jnp.zeros((B, H), f32)
    for t in range(T):                       # static unroll (max_len is small)
        h_new, c_new = lstm_step(pe_ref, t, h, c, e_whh_ref)
        valid = valid_all[t * B:(t + 1) * B, :]          # (B, 1) bool
        h = jnp.where(valid, h_new, h)                   # single VPU select
        c = jnp.where(valid, c_new, c)

    # ---------------- decoder: LSTMCell recurrence, stash hidden states -----
    hd = h                                   # decoder_state: h0 = z, c0 = 0
    cd = jnp.zeros((B, H), f32)
    for t in range(T):
        hd, cd = lstm_step(pd_ref, t, hd, cd, d_whh_ref)
        hs_ref[pl.ds(t * B, B), :] = hd                  # VMEM scratch stash

    # ---------------- hoisted vocab head: one matmul, one unmasked store ----
    out_ref[...] = (jnp.dot(hs_ref[...], lin_w_ref[...],
                            preferred_element_type=f32) + lin_b_ref[...])


# ----------------------------- wrapper / glue -------------------------------
def init_params(key, vocab_size, embedding_dim, hidden_size):
    ks = jax.random.split(key, 12)
    s = 1.0 / float(hidden_size) ** 0.5
    u = lambda k, shape: jax.random.uniform(k, shape, jnp.float32, -s, s)
    return dict(
        emb=jax.random.normal(ks[0], (vocab_size, embedding_dim), jnp.float32),
        enc_w_ih=u(ks[1], (4 * hidden_size, embedding_dim)),
        enc_w_hh=u(ks[2], (4 * hidden_size, hidden_size)),
        enc_b_ih=u(ks[3], (4 * hidden_size,)),
        enc_b_hh=u(ks[4], (4 * hidden_size,)),
        dec_w_ih=u(ks[5], (4 * hidden_size, embedding_dim)),
        dec_w_hh=u(ks[6], (4 * hidden_size, hidden_size)),
        dec_b_ih=u(ks[7], (4 * hidden_size,)),
        dec_b_hh=u(ks[8], (4 * hidden_size,)),
        lin_w=u(ks[9], (vocab_size, hidden_size)),
        lin_b=u(ks[10], (vocab_size,)),
    )


def _prep(params, inputs, targets, padding_idx, init_idx):
    # glue: gathers/transposes only, no hot compute; kernel inputs are FLAT.
    B, T = inputs.shape
    emb = params["emb"]
    E = emb.shape[1]
    x_enc = jnp.transpose(emb[inputs], (1, 0, 2)).reshape(T * B, E)
    lengths = jnp.sum(inputs != padding_idx, axis=1)                   # (B,)
    mask = (jnp.arange(T)[None, :] < lengths[:, None]).astype(jnp.float32)
    mask = jnp.transpose(mask, (1, 0)).reshape(T * B, 1)
    # teacher-forced decoder inputs: <s>, targets[:, :-1]
    dec_tok = jnp.concatenate(
        [jnp.full((B, 1), init_idx, dtype=inputs.dtype), targets[:, :-1]],
        axis=1)
    x_dec = jnp.transpose(emb[dec_tok], (1, 0, 2)).reshape(T * B, E)
    return x_enc, mask, x_dec


def seq2seq_forward(params, inputs, targets, *, padding_idx, init_idx,
                    hidden_size):
    B, T = inputs.shape
    V, E = params["emb"].shape
    H = hidden_size
    x_enc, mask, x_dec = _prep(params, inputs, targets, padding_idx, init_idx)

    # Fused gate weights: torch (4H, in) [i,f,g,o] -> transpose -> (in, 4H),
    # so x @ W gives the gates in lane order i|f|g|o.  Fused bias (1, 4H).
    e_wih = params["enc_w_ih"].T                                   # (E, 4H)
    e_whh = params["enc_w_hh"].T                                   # (H, 4H)
    e_b = (params["enc_b_ih"] + params["enc_b_hh"])[None, :]       # (1, 4H)
    d_wih = params["dec_w_ih"].T
    d_whh = params["dec_w_hh"].T
    d_b = (params["dec_b_ih"] + params["dec_b_hh"])[None, :]

    # Lane-dense head: zero-pad V up to a multiple of 128 lanes.
    v_pad = int(pl.cdiv(V, 128)) * 128
    lin_w = jnp.zeros((H, v_pad), jnp.float32).at[:, :V].set(params["lin_w"].T)
    lin_b = jnp.zeros((1, v_pad), jnp.float32).at[:, :V].set(
        params["lin_b"][None, :])

    vmem = pl.BlockSpec(memory_space=pltpu.MemorySpace.VMEM)
    kernel = functools.partial(seq2seq_kernel, T=T, B=B, H=H)
    out_flat = pl.pallas_call(
        kernel,
        out_shape=jax.ShapeDtypeStruct((T * B, v_pad), jnp.float32),
        in_specs=[vmem] * 11,
        out_specs=vmem,
        scratch_shapes=[pltpu.VMEM((T * B, 4 * H), jnp.float32),   # enc pre-gates
                        pltpu.VMEM((T * B, 4 * H), jnp.float32),   # dec pre-gates
                        pltpu.VMEM((T * B, H), jnp.float32)],      # dec hiddens
    )(x_enc, mask, x_dec, e_wih, e_whh, e_b, d_wih, d_whh, d_b, lin_w, lin_b)

    # (T*B, V_pad) -> drop padding lanes -> (B, T, V)
    return jnp.transpose(out_flat[:, :V].reshape(T, B, V), (1, 0, 2))


# -------------------------- pure-JAX reference ------------------------------
def reference_forward(params, inputs, targets, *, padding_idx, init_idx,
                      hidden_size):
    B, T = inputs.shape
    V, E = params["emb"].shape
    H = hidden_size
    x_enc_f, mask_f, x_dec_f = _prep(params, inputs, targets, padding_idx,
                                     init_idx)
    x_enc = x_enc_f.reshape(T, B, E)
    x_dec = x_dec_f.reshape(T, B, E)
    mask = mask_f.reshape(T, B, 1)
    enc_b = params["enc_b_ih"] + params["enc_b_hh"]
    dec_b = params["dec_b_ih"] + params["dec_b_hh"]

    def step(x_t, h, c, w_ih, w_hh, b):
        g = x_t @ w_ih.T + h @ w_hh.T + b
        i_g = jax.nn.sigmoid(g[:, :H])
        f_g = jax.nn.sigmoid(g[:, H:2 * H])
        g_g = jnp.tanh(g[:, 2 * H:3 * H])
        o_g = jax.nn.sigmoid(g[:, 3 * H:])
        c_new = f_g * c + i_g * g_g
        return o_g * jnp.tanh(c_new), c_new

    h = jnp.zeros((B, H), jnp.float32)
    c = jnp.zeros((B, H), jnp.float32)
    for t in range(T):
        h_new, c_new = step(x_enc[t], h, c, params["enc_w_ih"],
                            params["enc_w_hh"], enc_b)
        m = mask[t]
        h = m * h_new + (1.0 - m) * h
        c = m * c_new + (1.0 - m) * c

    hd, cd = h, jnp.zeros((B, H), jnp.float32)
    outs = []
    for t in range(T):
        hd, cd = step(x_dec[t], hd, cd, params["dec_w_ih"],
                      params["dec_w_hh"], dec_b)
        outs.append(hd @ params["lin_w"].T + params["lin_b"])
    return jnp.stack(outs, axis=1)                                 # (B, T, V)


# --------------------------------- main --------------------------------------
if __name__ == "__main__":
    VOCAB, EMB_DIM, HIDDEN = 32, 16, 32
    MAX_LEN, BATCH = 8, 8          # batch == max_len -> full teacher forcing
    PAD_IDX, INIT_IDX = 0, 1

    key = jax.random.PRNGKey(0)
    pkey, tkey = jax.random.split(key)
    params = init_params(pkey, VOCAB, EMB_DIM, HIDDEN)

    # right-padded token sequences with varying lengths
    lengths = jnp.array([8, 5, 3, 8, 2, 6, 7, 4], dtype=jnp.int32)
    toks = jax.random.randint(tkey, (BATCH, MAX_LEN), 2, VOCAB, dtype=jnp.int32)
    pos = jnp.arange(MAX_LEN)[None, :]
    inputs = jnp.where(pos < lengths[:, None], toks, PAD_IDX)

    # training-mode teacher-forcing branch of forward(): targets = inputs
    out = seq2seq_forward(params, inputs, inputs, padding_idx=PAD_IDX,
                          init_idx=INIT_IDX, hidden_size=HIDDEN)
    out = jax.block_until_ready(out)

    ref = reference_forward(params, inputs, inputs, padding_idx=PAD_IDX,
                            init_idx=INIT_IDX, hidden_size=HIDDEN)
    assert out.shape == (BATCH, MAX_LEN, VOCAB)
    assert jnp.allclose(out, ref, atol=1e-3, rtol=1e-3), \
        float(jnp.max(jnp.abs(out - ref)))
    print("KERNEL_OK")
</pallas_src>

<mosaic_0001>
module attributes {stable_mosaic.version = 11 : i64} {
  func.func @seq2seq_kernel(%arg0: memref<64x16xf32, #tpu.memory_space<vmem>>, %arg1: memref<64x1xf32, #tpu.memory_space<vmem>>, %arg2: memref<64x16xf32, #tpu.memory_space<vmem>>, %arg3: memref<16x128xf32, #tpu.memory_space<vmem>>, %arg4: memref<32x128xf32, #tpu.memory_space<vmem>>, %arg5: memref<1x128xf32, #tpu.memory_space<vmem>>, %arg6: memref<16x128xf32, #tpu.memory_space<vmem>>, %arg7: memref<32x128xf32, #tpu.memory_space<vmem>>, %arg8: memref<1x128xf32, #tpu.memory_space<vmem>>, %arg9: memref<32x128xf32, #tpu.memory_space<vmem>>, %arg10: memref<1x128xf32, #tpu.memory_space<vmem>>, %arg11: memref<64x128xf32, #tpu.memory_space<vmem>>, %arg12: memref<64x128xf32, #tpu.memory_space<vmem>>, %arg13: memref<64x128xf32, #tpu.memory_space<vmem>>, %arg14: memref<64x32xf32, #tpu.memory_space<vmem>>) attributes {dimension_semantics = [], scalar_prefetch = 0 : i64, scratch_operands = 3 : i64, tpu.core_type = #tpu.core_type<tc>} {
    %c0 = arith.constant 0 : index
    %c0_0 = arith.constant 0 : index
    %0 = vector.load %arg0[%c0, %c0_0] : memref<64x16xf32, #tpu.memory_space<vmem>>, vector<64x16xf32>
    %c0_1 = arith.constant 0 : index
    %c0_2 = arith.constant 0 : index
    %1 = vector.load %arg3[%c0_1, %c0_2] : memref<16x128xf32, #tpu.memory_space<vmem>>, vector<16x128xf32>
    %cst = arith.constant dense<0.000000e+00> : vector<64x128xf32>
    %2 = tpu.matmul %0, %1, %cst {dimension_numbers = #tpu.dot_dimension_numbers<[1], [0], [0], [1], [0, 0, 1, 1], [], []>} : vector<64x16xf32>, vector<16x128xf32>, vector<64x128xf32> -> vector<64x128xf32>
    %c0_3 = arith.constant 0 : index
    %c0_4 = arith.constant 0 : index
    %3 = vector.load %arg5[%c0_3, %c0_4] : memref<1x128xf32, #tpu.memory_space<vmem>>, vector<1x128xf32>
    %4 = vector.broadcast %3 : vector<1x128xf32> to vector<64x128xf32>
    %5 = arith.addf %2, %4 : vector<64x128xf32>
    %c0_5 = arith.constant 0 : index
    %c0_6 = arith.constant 0 : index
    %6 = vector.load %arg12[%c0_5, %c0_6] : memref<64x128xf32, #tpu.memory_space<vmem>>, vector<64x128xf32>
    tpu.vector_store %arg12[%c0_5, %c0_6], %5 {strides = array<i32>} : memref<64x128xf32, #tpu.memory_space<vmem>>, vector<64x128xf32>,
    %c0_7 = arith.constant 0 : index
    %c0_8 = arith.constant 0 : index
    %7 = vector.load %arg2[%c0_7, %c0_8] : memref<64x16xf32, #tpu.memory_space<vmem>>, vector<64x16xf32>
    %c0_9 = arith.constant 0 : index
    %c0_10 = arith.constant 0 : index
    %8 = vector.load %arg6[%c0_9, %c0_10] : memref<16x128xf32, #tpu.memory_space<vmem>>, vector<16x128xf32>
    %cst_11 = arith.constant dense<0.000000e+00> : vector<64x128xf32>
    %9 = tpu.matmul %7, %8, %cst_11 {dimension_numbers = #tpu.dot_dimension_numbers<[1], [0], [0], [1], [0, 0, 1, 1], [], []>} : vector<64x16xf32>, vector<16x128xf32>, vector<64x128xf32> -> vector<64x128xf32>
    %c0_12 = arith.constant 0 : index
    %c0_13 = arith.constant 0 : index
    %10 = vector.load %arg8[%c0_12, %c0_13] : memref<1x128xf32, #tpu.memory_space<vmem>>, vector<1x128xf32>
    %11 = vector.broadcast %10 : vector<1x128xf32> to vector<64x128xf32>
    %12 = arith.addf %9, %11 : vector<64x128xf32>
    %c0_14 = arith.constant 0 : index
    %c0_15 = arith.constant 0 : index
    %13 = vector.load %arg13[%c0_14, %c0_15] : memref<64x128xf32, #tpu.memory_space<vmem>>, vector<64x128xf32>
    tpu.vector_store %arg13[%c0_14, %c0_15], %12 {strides = array<i32>} : memref<64x128xf32, #tpu.memory_space<vmem>>, vector<64x128xf32>,
    %c0_16 = arith.constant 0 : index
    %c0_17 = arith.constant 0 : index
    %14 = vector.load %arg1[%c0_16, %c0_17] : memref<64x1xf32, #tpu.memory_space<vmem>>, vector<64x1xf32>
    %cst_18 = arith.constant 5.000000e-01 : f32
    %15 = vector.broadcast %cst_18 : f32 to vector<64x1xf32>
    %16 = arith.cmpf ogt, %14, %15 : vector<64x1xf32>
    %cst_19 = arith.constant 0.000000e+00 : f32
    %17 = vector.broadcast %cst_19 : f32 to vector<8x32xf32>
    %cst_20 = arith.constant 0.000000e+00 : f32
    %18 = vector.broadcast %cst_20 : f32 to vector<8x32xf32>
    %c0_21 = arith.constant 0 : index
    %c0_22 = arith.constant 0 : index
    %19 = vector.load %arg12[%c0_21, %c0_22] : memref<64x128xf32, #tpu.memory_space<vmem>>, vector<8x128xf32>
    %c0_23 = arith.constant 0 : index
    %c0_24 = arith.constant 0 : index
    %20 = vector.load %arg4[%c0_23, %c0_24] : memref<32x128xf32, #tpu.memory_space<vmem>>, vector<32x128xf32>
    %cst_25 = arith.constant dense<0.000000e+00> : vector<8x128xf32>
    %21 = tpu.matmul %17, %20, %cst_25 {dimension_numbers = #tpu.dot_dimension_numbers<[1], [0], [0], [1], [0, 0, 1, 1], [], []>} : vector<8x32xf32>, vector<32x128xf32>, vector<8x128xf32> -> vector<8x128xf32>
    %22 = arith.addf %19, %21 : vector<8x128xf32>
    %23 = arith.negf %22 : vector<8x128xf32>
    %24 = math.exp %23 : vector<8x128xf32>
    %cst_26 = arith.constant 1.000000e+00 : f32
    %25 = vector.broadcast %cst_26 : f32 to vector<8x128xf32>
    %26 = arith.addf %25, %24 : vector<8x128xf32>
    %27 = arith.divf %25, %26 : vector<8x128xf32>
    %28 = math.tanh %22 : vector<8x128xf32>
    %29 = vector.extract_strided_slice %27 {offsets = [0, 0], sizes = [8, 32], strides = [1, 1]} : vector<8x128xf32> to vector<8x32xf32>
    %30 = vector.extract_strided_slice %27 {offsets = [0, 32], sizes = [8, 32], strides = [1, 1]} : vector<8x128xf32> to vector<8x32xf32>
    %31 = vector.extract_strided_slice %28 {offsets = [0, 64], sizes = [8, 32], strides = [1, 1]} : vector<8x128xf32> to vector<8x32xf32>
    %32 = vector.extract_strided_slice %27 {offsets = [0, 96], sizes = [8, 32], strides = [1, 1]} : vector<8x128xf32> to vector<8x32xf32>
    %33 = arith.mulf %30, %18 : vector<8x32xf32>
    %34 = arith.mulf %29, %31 : vector<8x32xf32>
    %35 = arith.addf %33, %34 : vector<8x32xf32>
    %36 = math.tanh %35 : vector<8x32xf32>
    %37 = arith.mulf %32, %36 : vector<8x32xf32>
    %38 = vector.extract_strided_slice %16 {offsets = [0, 0], sizes = [8, 1], strides = [1, 1]} : vector<64x1xi1> to vector<8x1xi1>
    %39 = vector.shape_cast %38 : vector<8x1xi1> to vector<8x1xi1>
    %40 = vector.broadcast %39 : vector<8x1xi1> to vector<8x32xi1>
    %41 = arith.select %40, %37, %17 : vector<8x32xi1>, vector<8x32xf32>
    %42 = vector.shape_cast %38 : vector<8x1xi1> to vector<8x1xi1>
    %43 = vector.broadcast %42 : vector<8x1xi1> to vector<8x32xi1>
    %44 = arith.select %43, %35, %18 : vector<8x32xi1>, vector<8x32xf32>
    %c8 = arith.constant 8 : index
    %c0_27 = arith.constant 0 : index
    %45 = vector.load %arg12[%c8, %c0_27] : memref<64x128xf32, #tpu.memory_space<vmem>>, vector<8x128xf32>
    %c0_28 = arith.constant 0 : index
    %c0_29 = arith.constant 0 : index
    %46 = vector.load %arg4[%c0_28, %c0_29] : memref<32x128xf32, #tpu.memory_space<vmem>>, vector<32x128xf32>
    %cst_30 = arith.constant dense<0.000000e+00> : vector<8x128xf32>
    %47 = tpu.matmul %41, %46, %cst_30 {dimension_numbers = #tpu.dot_dimension_numbers<[1], [0], [0], [1], [0, 0, 1, 1], [], []>} : vector<8x32xf32>, vector<32x128xf32>, vector<8x128xf32> -> vector<8x128xf32>
    %48 = arith.addf %45, %47 : vector<8x128xf32>
    %49 = arith.negf %48 : vector<8x128xf32>
    %50 = math.exp %49 : vector<8x128xf32>
    %cst_31 = arith.constant 1.000000e+00 : f32
    %51 = vector.broadcast %cst_31 : f32 to vector<8x128xf32>
    %52 = arith.addf %51, %50 : vector<8x128xf32>
    %53 = arith.divf %51, %52 : vector<8x128xf32>
    %54 = math.tanh %48 : vector<8x128xf32>
    %55 = vector.extract_strided_slice %53 {offsets = [0, 0], sizes = [8, 32], strides = [1, 1]} : vector<8x128xf32> to vector<8x32xf32>
    %56 = vector.extract_strided_slice %53 {offsets = [0, 32], sizes = [8, 32], strides = [1, 1]} : vector<8x128xf32> to vector<8x32xf32>
    %57 = vector.extract_strided_slice %54 {offsets = [0, 64], sizes = [8, 32], strides = [1, 1]} : vector<8x128xf32> to vector<8x32xf32>
    %58 = vector.extract_strided_slice %53 {offsets = [0, 96], sizes = [8, 32], strides = [1, 1]} : vector<8x128xf32> to vector<8x32xf32>
    %59 = arith.mulf %56, %44 : vector<8x32xf32>
    %60 = arith.mulf %55, %57 : vector<8x32xf32>
    %61 = arith.addf %59, %60 : vector<8x32xf32>
    %62 = math.tanh %61 : vector<8x32xf32>
    %63 = arith.mulf %58, %62 : vector<8x32xf32>
    %64 = vector.extract_strided_slice %16 {offsets = [8, 0], sizes = [8, 1], strides = [1, 1]} : vector<64x1xi1> to vector<8x1xi1>
    %65 = vector.shape_cast %64 : vector<8x1xi1> to vector<8x1xi1>
    %66 = vector.broadcast %65 : vector<8x1xi1> to vector<8x32xi1>
    %67 = arith.select %66, %63, %41 : vector<8x32xi1>, vector<8x32xf32>
    %68 = vector.shape_cast %64 : vector<8x1xi1> to vector<8x1xi1>
    %69 = vector.broadcast %68 : vector<8x1xi1> to vector<8x32xi1>
    %70 = arith.select %69, %61, %44 : vector<8x32xi1>, vector<8x32xf32>
    %c16 = arith.constant 16 : index
    %c0_32 = arith.constant 0 : index
    %71 = vector.load %arg12[%c16, %c0_32] : memref<64x128xf32, #tpu.memory_space<vmem>>, vector<8x128xf32>
    %c0_33 = arith.constant 0 : index
    %c0_34 = arith.constant 0 : index
    %72 = vector.load %arg4[%c0_33, %c0_34] : memref<32x128xf32, #tpu.memory_space<vmem>>, vector<32x128xf32>
    %cst_35 = arith.constant dense<0.000000e+00> : vector<8x128xf32>
    %73 = tpu.matmul %67, %72, %cst_35 {dimension_numbers = #tpu.dot_dimension_numbers<[1], [0], [0], [1], [0, 0, 1, 1], [], []>} : vector<8x32xf32>, vector<32x128xf32>, vector<8x128xf32> -> vector<8x128xf32>
    %74 = arith.addf %71, %73 : vector<8x128xf32>
    %75 = arith.negf %74 : vector<8x128xf32>
    %76 = math.exp %75 : vector<8x128xf32>
    %cst_36 = arith.constant 1.000000e+00 : f32
    %77 = vector.broadcast %cst_36 : f32 to vector<8x128xf32>
    %78 = arith.addf %77, %76 : vector<8x128xf32>
    %79 = arith.divf %77, %78 : vector<8x128xf32>
    %80 = math.tanh %74 : vector<8x128xf32>
    %81 = vector.extract_strided_slice %79 {offsets = [0, 0], sizes = [8, 32], strides = [1, 1]} : vector<8x128xf32> to vector<8x32xf32>
    %82 = vector.extract_strided_slice %79 {offsets = [0, 32], sizes = [8, 32], strides = [1, 1]} : vector<8x128xf32> to vector<8x32xf32>
    %83 = vector.extract_strided_slice %80 {offsets = [0, 64], sizes = [8, 32], strides = [1, 1]} : vector<8x128xf32> to vector<8x32xf32>
    %84 = vector.extract_strided_slice %79 {offsets = [0, 96], sizes = [8, 32], strides = [1, 1]} : vector<8x128xf32> to vector<8x32xf32>
    %85 = arith.mulf %82, %70 : vector<8x32xf32>
    %86 = arith.mulf %81, %83 : vector<8x32xf32>
    %87 = arith.addf %85, %86 : vector<8x32xf32>
    %88 = math.tanh %87 : vector<8x32xf32>
    %89 = arith.mulf %84, %88 : vector<8x32xf32>
    %90 = vector.extract_strided_slice %16 {offsets = [16, 0], sizes = [8, 1], strides = [1, 1]} : vector<64x1xi1> to vector<8x1xi1>
    %91 = vector.shape_cast %90 : vector<8x1xi1> to vector<8x1xi1>
    %92 = vector.broadcast %91 : vector<8x1xi1> to vector<8x32xi1>
    %93 = arith.select %92, %89, %67 : vector<8x32xi1>, vector<8x32xf32>
    %94 = vector.shape_cast %90 : vector<8x1xi1> to vector<8x1xi1>
    %95 = vector.broadcast %94 : vector<8x1xi1> to vector<8x32xi1>
    %96 = arith.select %95, %87, %70 : vector<8x32xi1>, vector<8x32xf32>
    %c24 = arith.constant 24 : index
    %c0_37 = arith.constant 0 : index
    %97 = vector.load %arg12[%c24, %c0_37] : memref<64x128xf32, #tpu.memory_space<vmem>>, vector<8x128xf32>
    %c0_38 = arith.constant 0 : index
    %c0_39 = arith.constant 0 : index
    %98 = vector.load %arg4[%c0_38, %c0_39] : memref<32x128xf32, #tpu.memory_space<vmem>>, vector<32x128xf32>
    %cst_40 = arith.constant dense<0.000000e+00> : vector<8x128xf32>
    %99 = tpu.matmul %93, %98, %cst_40 {dimension_numbers = #tpu.dot_dimension_numbers<[1], [0], [0], [1], [0, 0, 1, 1], [], []>} : vector<8x32xf32>, vector<32x128xf32>, vector<8x128xf32> -> vector<8x128xf32>
    %100 = arith.addf %97, %99 : vector<8x128xf32>
    %101 = arith.negf %100 : vector<8x128xf32>
    %102 = math.exp %101 : vector<8x128xf32>
    %cst_41 = arith.constant 1.000000e+00 : f32
    %103 = vector.broadcast %cst_41 : f32 to vector<8x128xf32>
    %104 = arith.addf %103, %102 : vector<8x128xf32>
    %105 = arith.divf %103, %104 : vector<8x128xf32>
    %106 = math.tanh %100 : vector<8x128xf32>
    %107 = vector.extract_strided_slice %105 {offsets = [0, 0], sizes = [8, 32], strides = [1, 1]} : vector<8x128xf32> to vector<8x32xf32>
    %108 = vector.extract_strided_slice %105 {offsets = [0, 32], sizes = [8, 32], strides = [1, 1]} : vector<8x128xf32> to vector<8x32xf32>
    %109 = vector.extract_strided_slice %106 {offsets = [0, 64], sizes = [8, 32], strides = [1, 1]} : vector<8x128xf32> to vector<8x32xf32>
    %110 = vector.extract_strided_slice %105 {offsets = [0, 96], sizes = [8, 32], strides = [1, 1]} : vector<8x128xf32> to vector<8x32xf32>
    %111 = arith.mulf %108, %96 : vector<8x32xf32>
    %112 = arith.mulf %107, %109 : vector<8x32xf32>
    %113 = arith.addf %111, %112 : vector<8x32xf32>
    %114 = math.tanh %113 : vector<8x32xf32>
    %115 = arith.mulf %110, %114 : vector<8x32xf32>
    %116 = vector.extract_strided_slice %16 {offsets = [24, 0], sizes = [8, 1], strides = [1, 1]} : vector<64x1xi1> to vector<8x1xi1>
    %117 = vector.shape_cast %116 : vector<8x1xi1> to vector<8x1xi1>
    %118 = vector.broadcast %117 : vector<8x1xi1> to vector<8x32xi1>
    %119 = arith.select %118, %115, %93 : vector<8x32xi1>, vector<8x32xf32>
    %120 = vector.shape_cast %116 : vector<8x1xi1> to vector<8x1xi1>
    %121 = vector.broadcast %120 : vector<8x1xi1> to vector<8x32xi1>
    %122 = arith.select %121, %113, %96 : vector<8x32xi1>, vector<8x32xf32>
    %c32 = arith.constant 32 : index
    %c0_42 = arith.constant 0 : index
    %123 = vector.load %arg12[%c32, %c0_42] : memref<64x128xf32, #tpu.memory_space<vmem>>, vector<8x128xf32>
    %c0_43 = arith.constant 0 : index
    %c0_44 = arith.constant 0 : index
    %124 = vector.load %arg4[%c0_43, %c0_44] : memref<32x128xf32, #tpu.memory_space<vmem>>, vector<32x128xf32>
    %cst_45 = arith.constant dense<0.000000e+00> : vector<8x128xf32>
    %125 = tpu.matmul %119, %124, %cst_45 {dimension_numbers = #tpu.dot_dimension_numbers<[1], [0], [0], [1], [0, 0, 1, 1], [], []>} : vector<8x32xf32>, vector<32x128xf32>, vector<8x128xf32> -> vector<8x128xf32>
    %126 = arith.addf %123, %125 : vector<8x128xf32>
    %127 = arith.negf %126 : vector<8x128xf32>
    %128 = math.exp %127 : vector<8x128xf32>
    %cst_46 = arith.constant 1.000000e+00 : f32
    %129 = vector.broadcast %cst_46 : f32 to vector<8x128xf32>
    %130 = arith.addf %129, %128 : vector<8x128xf32>
    %131 = arith.divf %129, %130 : vector<8x128xf32>
    %132 = math.tanh %126 : vector<8x128xf32>
    %133 = vector.extract_strided_slice %131 {offsets = [0, 0], sizes = [8, 32], strides = [1, 1]} : vector<8x128xf32> to vector<8x32xf32>
    %134 = vector.extract_strided_slice %131 {offsets = [0, 32], sizes = [8, 32], strides = [1, 1]} : vector<8x128xf32> to vector<8x32xf32>
    %135 = vector.extract_strided_slice %132 {offsets = [0, 64], sizes = [8, 32], strides = [1, 1]} : vector<8x128xf32> to vector<8x32xf32>
    %136 = vector.extract_strided_slice %131 {offsets = [0, 96], sizes = [8, 32], strides = [1, 1]} : vector<8x128xf32> to vector<8x32xf32>
    %137 = arith.mulf %134, %122 : vector<8x32xf32>
    %138 = arith.mulf %133, %135 : vector<8x32xf32>
    %139 = arith.addf %137, %138 : vector<8x32xf32>
    %140 = math.tanh %139 : vector<8x32xf32>
    %141 = arith.mulf %136, %140 : vector<8x32xf32>
    %142 = vector.extract_strided_slice %16 {offsets = [32, 0], sizes = [8, 1], strides = [1, 1]} : vector<64x1xi1> to vector<8x1xi1>
    %143 = vector.shape_cast %142 : vector<8x1xi1> to vector<8x1xi1>
    %144 = vector.broadcast %143 : vector<8x1xi1> to vector<8x32xi1>
    %145 = arith.select %144, %141, %119 : vector<8x32xi1>, vector<8x32xf32>
    %146 = vector.shape_cast %142 : vector<8x1xi1> to vector<8x1xi1>
    %147 = vector.broadcast %146 : vector<8x1xi1> to vector<8x32xi1>
    %148 = arith.select %147, %139, %122 : vector<8x32xi1>, vector<8x32xf32>
    %c40 = arith.constant 40 : index
    %c0_47 = arith.constant 0 : index
    %149 = vector.load %arg12[%c40, %c0_47] : memref<64x128xf32, #tpu.memory_space<vmem>>, vector<8x128xf32>
    %c0_48 = arith.constant 0 : index
    %c0_49 = arith.constant 0 : index
    %150 = vector.load %arg4[%c0_48, %c0_49] : memref<32x128xf32, #tpu.memory_space<vmem>>, vector<32x128xf32>
    %cst_50 = arith.constant dense<0.000000e+00> : vector<8x128xf32>
    %151 = tpu.matmul %145, %150, %cst_50 {dimension_numbers = #tpu.dot_dimension_numbers<[1], [0], [0], [1], [0, 0, 1, 1], [], []>} : vector<8x32xf32>, vector<32x128xf32>, vector<8x128xf32> -> vector<8x128xf32>
    %152 = arith.addf %149, %151 : vector<8x128xf32>
    %153 = arith.negf %152 : vector<8x128xf32>
    %154 = math.exp %153 : vector<8x128xf32>
    %cst_51 = arith.constant 1.000000e+00 : f32
    %155 = vector.broadcast %cst_51 : f32 to vector<8x128xf32>
    %156 = arith.addf %155, %154 : vector<8x128xf32>
    %157 = arith.divf %155, %156 : vector<8x128xf32>
    %158 = math.tanh %152 : vector<8x128xf32>
    %159 = vector.extract_strided_slice %157 {offsets = [0, 0], sizes = [8, 32], strides = [1, 1]} : vector<8x128xf32> to vector<8x32xf32>
    %160 = vector.extract_strided_slice %157 {offsets = [0, 32], sizes = [8, 32], strides = [1, 1]} : vector<8x128xf32> to vector<8x32xf32>
    %161 = vector.extract_strided_slice %158 {offsets = [0, 64], sizes = [8, 32], strides = [1, 1]} : vector<8x128xf32> to vector<8x32xf32>
    %162 = vector.extract_strided_slice %157 {offsets = [0, 96], sizes = [8, 32], strides = [1, 1]} : vector<8x128xf32> to vector<8x32xf32>
    %163 = arith.mulf %160, %148 : vector<8x32xf32>
    %164 = arith.mulf %159, %161 : vector<8x32xf32>
    %165 = arith.addf %163, %164 : vector<8x32xf32>
    %166 = math.tanh %165 : vector<8x32xf32>
    %167 = arith.mulf %162, %166 : vector<8x32xf32>
    %168 = vector.extract_strided_slice %16 {offsets = [40, 0], sizes = [8, 1], strides = [1, 1]} : vector<64x1xi1> to vector<8x1xi1>
    %169 = vector.shape_cast %168 : vector<8x1xi1> to vector<8x1xi1>
    %170 = vector.broadcast %169 : vector<8x1xi1> to vector<8x32xi1>
    %171 = arith.select %170, %167, %145 : vector<8x32xi1>, vector<8x32xf32>
    %172 = vector.shape_cast %168 : vector<8x1xi1> to vector<8x1xi1>
    %173 = vector.broadcast %172 : vector<8x1xi1> to vector<8x32xi1>
    %174 = arith.select %173, %165, %148 : vector<8x32xi1>, vector<8x32xf32>
    %c48 = arith.constant 48 : index
    %c0_52 = arith.constant 0 : index
    %175 = vector.load %arg12[%c48, %c0_52] : memref<64x128xf32, #tpu.memory_space<vmem>>, vector<8x128xf32>
    %c0_53 = arith.constant 0 : index
    %c0_54 = arith.constant 0 : index
    %176 = vector.load %arg4[%c0_53, %c0_54] : memref<32x128xf32, #tpu.memory_space<vmem>>, vector<32x128xf32>
    %cst_55 = arith.constant dense<0.000000e+00> : vector<8x128xf32>
    %177 = tpu.matmul %171, %176, %cst_55 {dimension_numbers = #tpu.dot_dimension_numbers<[1], [0], [0], [1], [0, 0, 1, 1], [], []>} : vector<8x32xf32>, vector<32x128xf32>, vector<8x128xf32> -> vector<8x128xf32>
    %178 = arith.addf %175, %177 : vector<8x128xf32>
    %179 = arith.negf %178 : vector<8x128xf32>
    %180 = math.exp %179 : vector<8x128xf32>
    %cst_56 = arith.constant 1.000000e+00 : f32
    %181 = vector.broadcast %cst_56 : f32 to vector<8x128xf32>
    %182 = arith.addf %181, %180 : vector<8x128xf32>
    %183 = arith.divf %181, %182 : vector<8x128xf32>
    %184 = math.tanh %178 : vector<8x128xf32>
    %185 = vector.extract_strided_slice %183 {offsets = [0, 0], sizes = [8, 32], strides = [1, 1]} : vector<8x128xf32> to vector<8x32xf32>
    %186 = vector.extract_strided_slice %183 {offsets = [0, 32], sizes = [8, 32], strides = [1, 1]} : vector<8x128xf32> to vector<8x32xf32>
    %187 = vector.extract_strided_slice %184 {offsets = [0, 64], sizes = [8, 32], strides = [1, 1]} : vector<8x128xf32> to vector<8x32xf32>
    %188 = vector.extract_strided_slice %183 {offsets = [0, 96], sizes = [8, 32], strides = [1, 1]} : vector<8x128xf32> to vector<8x32xf32>
    %189 = arith.mulf %186, %174 : vector<8x32xf32>
    %190 = arith.mulf %185, %187 : vector<8x32xf32>
    %191 = arith.addf %189, %190 : vector<8x32xf32>
    %192 = math.tanh %191 : vector<8x32xf32>
    %193 = arith.mulf %188, %192 : vector<8x32xf32>
    %194 = vector.extract_strided_slice %16 {offsets = [48, 0], sizes = [8, 1], strides = [1, 1]} : vector<64x1xi1> to vector<8x1xi1>
    %195 = vector.shape_cast %194 : vector<8x1xi1> to vector<8x1xi1>
    %196 = vector.broadcast %195 : vector<8x1xi1> to vector<8x32xi1>
    %197 = arith.select %196, %193, %171 : vector<8x32xi1>, vector<8x32xf32>
    %198 = vector.shape_cast %194 : vector<8x1xi1> to vector<8x1xi1>
    %199 = vector.broadcast %198 : vector<8x1xi1> to vector<8x32xi1>
    %200 = arith.select %199, %191, %174 : vector<8x32xi1>, vector<8x32xf32>
    %c56 = arith.constant 56 : index
    %c0_57 = arith.constant 0 : index
    %201 = vector.load %arg12[%c56, %c0_57] : memref<64x128xf32, #tpu.memory_space<vmem>>, vector<8x128xf32>
    %c0_58 = arith.constant 0 : index
    %c0_59 = arith.constant 0 : index
    %202 = vector.load %arg4[%c0_58, %c0_59] : memref<32x128xf32, #tpu.memory_space<vmem>>, vector<32x128xf32>
    %cst_60 = arith.constant dense<0.000000e+00> : vector<8x128xf32>
    %203 = tpu.matmul %197, %202, %cst_60 {dimension_numbers = #tpu.dot_dimension_numbers<[1], [0], [0], [1], [0, 0, 1, 1], [], []>} : vector<8x32xf32>, vector<32x128xf32>, vector<8x128xf32> -> vector<8x128xf32>
    %204 = arith.addf %201, %203 : vector<8x128xf32>
    %205 = arith.negf %204 : vector<8x128xf32>
    %206 = math.exp %205 : vector<8x128xf32>
    %cst_61 = arith.constant 1.000000e+00 : f32
    %207 = vector.broadcast %cst_61 : f32 to vector<8x128xf32>
    %208 = arith.addf %207, %206 : vector<8x128xf32>
    %209 = arith.divf %207, %208 : vector<8x128xf32>
    %210 = math.tanh %204 : vector<8x128xf32>
    %211 = vector.extract_strided_slice %209 {offsets = [0, 0], sizes = [8, 32], strides = [1, 1]} : vector<8x128xf32> to vector<8x32xf32>
    %212 = vector.extract_strided_slice %209 {offsets = [0, 32], sizes = [8, 32], strides = [1, 1]} : vector<8x128xf32> to vector<8x32xf32>
    %213 = vector.extract_strided_slice %210 {offsets = [0, 64], sizes = [8, 32], strides = [1, 1]} : vector<8x128xf32> to vector<8x32xf32>
    %214 = vector.extract_strided_slice %209 {offsets = [0, 96], sizes = [8, 32], strides = [1, 1]} : vector<8x128xf32> to vector<8x32xf32>
    %215 = arith.mulf %212, %200 : vector<8x32xf32>
    %216 = arith.mulf %211, %213 : vector<8x32xf32>
    %217 = arith.addf %215, %216 : vector<8x32xf32>
    %218 = math.tanh %217 : vector<8x32xf32>
    %219 = arith.mulf %214, %218 : vector<8x32xf32>
    %220 = vector.extract_strided_slice %16 {offsets = [56, 0], sizes = [8, 1], strides = [1, 1]} : vector<64x1xi1> to vector<8x1xi1>
    %221 = vector.shape_cast %220 : vector<8x1xi1> to vector<8x1xi1>
    %222 = vector.broadcast %221 : vector<8x1xi1> to vector<8x32xi1>
    %223 = arith.select %222, %219, %197 : vector<8x32xi1>, vector<8x32xf32>
    %cst_62 = arith.constant 0.000000e+00 : f32
    %224 = vector.broadcast %cst_62 : f32 to vector<8x32xf32>
    %c0_63 = arith.constant 0 : index
    %c0_64 = arith.constant 0 : index
    %225 = vector.load %arg13[%c0_63, %c0_64] : memref<64x128xf32, #tpu.memory_space<vmem>>, vector<8x128xf32>
    %c0_65 = arith.constant 0 : index
    %c0_66 = arith.constant 0 : index
    %226 = vector.load %arg7[%c0_65, %c0_66] : memref<32x128xf32, #tpu.memory_space<vmem>>, vector<32x128xf32>
    %cst_67 = arith.constant dense<0.000000e+00> : vector<8x128xf32>
    %227 = tpu.matmul %223, %226, %cst_67 {dimension_numbers = #tpu.dot_dimension_numbers<[1], [0], [0], [1], [0, 0, 1, 1], [], []>} : vector<8x32xf32>, vector<32x128xf32>, vector<8x128xf32> -> vector<8x128xf32>
    %228 = arith.addf %225, %227 : vector<8x128xf32>
    %229 = arith.negf %228 : vector<8x128xf32>
    %230 = math.exp %229 : vector<8x128xf32>
    %cst_68 = arith.constant 1.000000e+00 : f32
    %231 = vector.broadcast %cst_68 : f32 to vector<8x128xf32>
    %232 = arith.addf %231, %230 : vector<8x128xf32>
    %233 = arith.divf %231, %232 : vector<8x128xf32>
    %234 = math.tanh %228 : vector<8x128xf32>
    %235 = vector.extract_strided_slice %233 {offsets = [0, 0], sizes = [8, 32], strides = [1, 1]} : vector<8x128xf32> to vector<8x32xf32>
    %236 = vector.extract_strided_slice %233 {offsets = [0, 32], sizes = [8, 32], strides = [1, 1]} : vector<8x128xf32> to vector<8x32xf32>
    %237 = vector.extract_strided_slice %234 {offsets = [0, 64], sizes = [8, 32], strides = [1, 1]} : vector<8x128xf32> to vector<8x32xf32>
    %238 = vector.extract_strided_slice %233 {offsets = [0, 96], sizes = [8, 32], strides = [1, 1]} : vector<8x128xf32> to vector<8x32xf32>
    %239 = arith.mulf %236, %224 : vector<8x32xf32>
    %240 = arith.mulf %235, %237 : vector<8x32xf32>
    %241 = arith.addf %239, %240 : vector<8x32xf32>
    %242 = math.tanh %241 : vector<8x32xf32>
    %243 = arith.mulf %238, %242 : vector<8x32xf32>
    %c0_69 = arith.constant 0 : index
    %c0_70 = arith.constant 0 : index
    %244 = vector.load %arg14[%c0_69, %c0_70] : memref<64x32xf32, #tpu.memory_space<vmem>>, vector<8x32xf32>
    tpu.vector_store %arg14[%c0_69, %c0_70], %243 {strides = array<i32>} : memref<64x32xf32, #tpu.memory_space<vmem>>, vector<8x32xf32>,
    %c8_71 = arith.constant 8 : index
    %c0_72 = arith.constant 0 : index
    %245 = vector.load %arg13[%c8_71, %c0_72] : memref<64x128xf32, #tpu.memory_space<vmem>>, vector<8x128xf32>
    %c0_73 = arith.constant 0 : index
    %c0_74 = arith.constant 0 : index
    %246 = vector.load %arg7[%c0_73, %c0_74] : memref<32x128xf32, #tpu.memory_space<vmem>>, vector<32x128xf32>
    %cst_75 = arith.constant dense<0.000000e+00> : vector<8x128xf32>
    %247 = tpu.matmul %243, %246, %cst_75 {dimension_numbers = #tpu.dot_dimension_numbers<[1], [0], [0], [1], [0, 0, 1, 1], [], []>} : vector<8x32xf32>, vector<32x128xf32>, vector<8x128xf32> -> vector<8x128xf32>
    %248 = arith.addf %245, %247 : vector<8x128xf32>
    %249 = arith.negf %248 : vector<8x128xf32>
    %250 = math.exp %249 : vector<8x128xf32>
    %cst_76 = arith.constant 1.000000e+00 : f32
    %251 = vector.broadcast %cst_76 : f32 to vector<8x128xf32>
    %252 = arith.addf %251, %250 : vector<8x128xf32>
    %253 = arith.divf %251, %252 : vector<8x128xf32>
    %254 = math.tanh %248 : vector<8x128xf32>
    %255 = vector.extract_strided_slice %253 {offsets = [0, 0], sizes = [8, 32], strides = [1, 1]} : vector<8x128xf32> to vector<8x32xf32>
    %256 = vector.extract_strided_slice %253 {offsets = [0, 32], sizes = [8, 32], strides = [1, 1]} : vector<8x128xf32> to vector<8x32xf32>
    %257 = vector.extract_strided_slice %254 {offsets = [0, 64], sizes = [8, 32], strides = [1, 1]} : vector<8x128xf32> to vector<8x32xf32>
    %258 = vector.extract_strided_slice %253 {offsets = [0, 96], sizes = [8, 32], strides = [1, 1]} : vector<8x128xf32> to vector<8x32xf32>
    %259 = arith.mulf %256, %241 : vector<8x32xf32>
    %260 = arith.mulf %255, %257 : vector<8x32xf32>
    %261 = arith.addf %259, %260 : vector<8x32xf32>
    %262 = math.tanh %261 : vector<8x32xf32>
    %263 = arith.mulf %258, %262 : vector<8x32xf32>
    %c8_77 = arith.constant 8 : index
    %c0_78 = arith.constant 0 : index
    %264 = vector.load %arg14[%c8_77, %c0_78] : memref<64x32xf32, #tpu.memory_space<vmem>>, vector<8x32xf32>
    tpu.vector_store %arg14[%c8_77, %c0_78], %263 {strides = array<i32>} : memref<64x32xf32, #tpu.memory_space<vmem>>, vector<8x32xf32>,
    %c16_79 = arith.constant 16 : index
    %c0_80 = arith.constant 0 : index
    %265 = vector.load %arg13[%c16_79, %c0_80] : memref<64x128xf32, #tpu.memory_space<vmem>>, vector<8x128xf32>
    %c0_81 = arith.constant 0 : index
    %c0_82 = arith.constant 0 : index
    %266 = vector.load %arg7[%c0_81, %c0_82] : memref<32x128xf32, #tpu.memory_space<vmem>>, vector<32x128xf32>
    %cst_83 = arith.constant dense<0.000000e+00> : vector<8x128xf32>
    %267 = tpu.matmul %263, %266, %cst_83 {dimension_numbers = #tpu.dot_dimension_numbers<[1], [0], [0], [1], [0, 0, 1, 1], [], []>} : vector<8x32xf32>, vector<32x128xf32>, vector<8x128xf32> -> vector<8x128xf32>
    %268 = arith.addf %265, %267 : vector<8x128xf32>
    %269 = arith.negf %268 : vector<8x128xf32>
    %270 = math.exp %269 : vector<8x128xf32>
    %cst_84 = arith.constant 1.000000e+00 : f32
    %271 = vector.broadcast %cst_84 : f32 to vector<8x128xf32>
    %272 = arith.addf %271, %270 : vector<8x128xf32>
    %273 = arith.divf %271, %272 : vector<8x128xf32>
    %274 = math.tanh %268 : vector<8x128xf32>
    %275 = vector.extract_strided_slice %273 {offsets = [0, 0], sizes = [8, 32], strides = [1, 1]} : vector<8x128xf32> to vector<8x32xf32>
    %276 = vector.extract_strided_slice %273 {offsets = [0, 32], sizes = [8, 32], strides = [1, 1]} : vector<8x128xf32> to vector<8x32xf32>
    %277 = vector.extract_strided_slice %274 {offsets = [0, 64], sizes = [8, 32], strides = [1, 1]} : vector<8x128xf32> to vector<8x32xf32>
    %278 = vector.extract_strided_slice %273 {offsets = [0, 96], sizes = [8, 32], strides = [1, 1]} : vector<8x128xf32> to vector<8x32xf32>
    %279 = arith.mulf %276, %261 : vector<8x32xf32>
    %280 = arith.mulf %275, %277 : vector<8x32xf32>
    %281 = arith.addf %279, %280 : vector<8x32xf32>
    %282 = math.tanh %281 : vector<8x32xf32>
    %283 = arith.mulf %278, %282 : vector<8x32xf32>
    %c16_85 = arith.constant 16 : index
    %c0_86 = arith.constant 0 : index
    %284 = vector.load %arg14[%c16_85, %c0_86] : memref<64x32xf32, #tpu.memory_space<vmem>>, vector<8x32xf32>
    tpu.vector_store %arg14[%c16_85, %c0_86], %283 {strides = array<i32>} : memref<64x32xf32, #tpu.memory_space<vmem>>, vector<8x32xf32>,
    %c24_87 = arith.constant 24 : index
    %c0_88 = arith.constant 0 : index
    %285 = vector.load %arg13[%c24_87, %c0_88] : memref<64x128xf32, #tpu.memory_space<vmem>>, vector<8x128xf32>
    %c0_89 = arith.constant 0 : index
    %c0_90 = arith.constant 0 : index
    %286 = vector.load %arg7[%c0_89, %c0_90] : memref<32x128xf32, #tpu.memory_space<vmem>>, vector<32x128xf32>
    %cst_91 = arith.constant dense<0.000000e+00> : vector<8x128xf32>
    %287 = tpu.matmul %283, %286, %cst_91 {dimension_numbers = #tpu.dot_dimension_numbers<[1], [0], [0], [1], [0, 0, 1, 1], [], []>} : vector<8x32xf32>, vector<32x128xf32>, vector<8x128xf32> -> vector<8x128xf32>
    %288 = arith.addf %285, %287 : vector<8x128xf32>
    %289 = arith.negf %288 : vector<8x128xf32>
    %290 = math.exp %289 : vector<8x128xf32>
    %cst_92 = arith.constant 1.000000e+00 : f32
    %291 = vector.broadcast %cst_92 : f32 to vector<8x128xf32>
    %292 = arith.addf %291, %290 : vector<8x128xf32>
    %293 = arith.divf %291, %292 : vector<8x128xf32>
    %294 = math.tanh %288 : vector<8x128xf32>
    %295 = vector.extract_strided_slice %293 {offsets = [0, 0], sizes = [8, 32], strides = [1, 1]} : vector<8x128xf32> to vector<8x32xf32>
    %296 = vector.extract_strided_slice %293 {offsets = [0, 32], sizes = [8, 32], strides = [1, 1]} : vector<8x128xf32> to vector<8x32xf32>
    %297 = vector.extract_strided_slice %294 {offsets = [0, 64], sizes = [8, 32], strides = [1, 1]} : vector<8x128xf32> to vector<8x32xf32>
    %298 = vector.extract_strided_slice %293 {offsets = [0, 96], sizes = [8, 32], strides = [1, 1]} : vector<8x128xf32> to vector<8x32xf32>
    %299 = arith.mulf %296, %281 : vector<8x32xf32>
    %300 = arith.mulf %295, %297 : vector<8x32xf32>
    %301 = arith.addf %299, %300 : vector<8x32xf32>
    %302 = math.tanh %301 : vector<8x32xf32>
    %303 = arith.mulf %298, %302 : vector<8x32xf32>
    %c24_93 = arith.constant 24 : index
    %c0_94 = arith.constant 0 : index
    %304 = vector.load %arg14[%c24_93, %c0_94] : memref<64x32xf32, #tpu.memory_space<vmem>>, vector<8x32xf32>
    tpu.vector_store %arg14[%c24_93, %c0_94], %303 {strides = array<i32>} : memref<64x32xf32, #tpu.memory_space<vmem>>, vector<8x32xf32>,
    %c32_95 = arith.constant 32 : index
    %c0_96 = arith.constant 0 : index
    %305 = vector.load %arg13[%c32_95, %c0_96] : memref<64x128xf32, #tpu.memory_space<vmem>>, vector<8x128xf32>
    %c0_97 = arith.constant 0 : index
    %c0_98 = arith.constant 0 : index
    %306 = vector.load %arg7[%c0_97, %c0_98] : memref<32x128xf32, #tpu.memory_space<vmem>>, vector<32x128xf32>
    %cst_99 = arith.constant dense<0.000000e+00> : vector<8x128xf32>
    %307 = tpu.matmul %303, %306, %cst_99 {dimension_numbers = #tpu.dot_dimension_numbers<[1], [0], [0], [1], [0, 0, 1, 1], [], []>} : vector<8x32xf32>, vector<32x128xf32>, vector<8x128xf32> -> vector<8x128xf32>
    %308 = arith.addf %305, %307 : vector<8x128xf32>
    %309 = arith.negf %308 : vector<8x128xf32>
    %310 = math.exp %309 : vector<8x128xf32>
    %cst_100 = arith.constant 1.000000e+00 : f32
    %311 = vector.broadcast %cst_100 : f32 to vector<8x128xf32>
    %312 = arith.addf %311, %310 : vector<8x128xf32>
    %313 = arith.divf %311, %312 : vector<8x128xf32>
    %314 = math.tanh %308 : vector<8x128xf32>
    %315 = vector.extract_strided_slice %313 {offsets = [0, 0], sizes = [8, 32], strides = [1, 1]} : vector<8x128xf32> to vector<8x32xf32>
    %316 = vector.extract_strided_slice %313 {offsets = [0, 32], sizes = [8, 32], strides = [1, 1]} : vector<8x128xf32> to vector<8x32xf32>
    %317 = vector.extract_strided_slice %314 {offsets = [0, 64], sizes = [8, 32], strides = [1, 1]} : vector<8x128xf32> to vector<8x32xf32>
    %318 = vector.extract_strided_slice %313 {offsets = [0, 96], sizes = [8, 32], strides = [1, 1]} : vector<8x128xf32> to vector<8x32xf32>
    %319 = arith.mulf %316, %301 : vector<8x32xf32>
    %320 = arith.mulf %315, %317 : vector<8x32xf32>
    %321 = arith.addf %319, %320 : vector<8x32xf32>
    %322 = math.tanh %321 : vector<8x32xf32>
    %323 = arith.mulf %318, %322 : vector<8x32xf32>
    %c32_101 = arith.constant 32 : index
    %c0_102 = arith.constant 0 : index
    %324 = vector.load %arg14[%c32_101, %c0_102] : memref<64x32xf32, #tpu.memory_space<vmem>>, vector<8x32xf32>
    tpu.vector_store %arg14[%c32_101, %c0_102], %323 {strides = array<i32>} : memref<64x32xf32, #tpu.memory_space<vmem>>, vector<8x32xf32>,
    %c40_103 = arith.constant 40 : index
    %c0_104 = arith.constant 0 : index
    %325 = vector.load %arg13[%c40_103, %c0_104] : memref<64x128xf32, #tpu.memory_space<vmem>>, vector<8x128xf32>
    %c0_105 = arith.constant 0 : index
    %c0_106 = arith.constant 0 : index
    %326 = vector.load %arg7[%c0_105, %c0_106] : memref<32x128xf32, #tpu.memory_space<vmem>>, vector<32x128xf32>
    %cst_107 = arith.constant dense<0.000000e+00> : vector<8x128xf32>
    %327 = tpu.matmul %323, %326, %cst_107 {dimension_numbers = #tpu.dot_dimension_numbers<[1], [0], [0], [1], [0, 0, 1, 1], [], []>} : vector<8x32xf32>, vector<32x128xf32>, vector<8x128xf32> -> vector<8x128xf32>
    %328 = arith.addf %325, %327 : vector<8x128xf32>
    %329 = arith.negf %328 : vector<8x128xf32>
    %330 = math.exp %329 : vector<8x128xf32>
    %cst_108 = arith.constant 1.000000e+00 : f32
    %331 = vector.broadcast %cst_108 : f32 to vector<8x128xf32>
    %332 = arith.addf %331, %330 : vector<8x128xf32>
    %333 = arith.divf %331, %332 : vector<8x128xf32>
    %334 = math.tanh %328 : vector<8x128xf32>
    %335 = vector.extract_strided_slice %333 {offsets = [0, 0], sizes = [8, 32], strides = [1, 1]} : vector<8x128xf32> to vector<8x32xf32>
    %336 = vector.extract_strided_slice %333 {offsets = [0, 32], sizes = [8, 32], strides = [1, 1]} : vector<8x128xf32> to vector<8x32xf32>
    %337 = vector.extract_strided_slice %334 {offsets = [0, 64], sizes = [8, 32], strides = [1, 1]} : vector<8x128xf32> to vector<8x32xf32>
    %338 = vector.extract_strided_slice %333 {offsets = [0, 96], sizes = [8, 32], strides = [1, 1]} : vector<8x128xf32> to vector<8x32xf32>
    %339 = arith.mulf %336, %321 : vector<8x32xf32>
    %340 = arith.mulf %335, %337 : vector<8x32xf32>
    %341 = arith.addf %339, %340 : vector<8x32xf32>
    %342 = math.tanh %341 : vector<8x32xf32>
    %343 = arith.mulf %338, %342 : vector<8x32xf32>
    %c40_109 = arith.constant 40 : index
    %c0_110 = arith.constant 0 : index
    %344 = vector.load %arg14[%c40_109, %c0_110] : memref<64x32xf32, #tpu.memory_space<vmem>>, vector<8x32xf32>
    tpu.vector_store %arg14[%c40_109, %c0_110], %343 {strides = array<i32>} : memref<64x32xf32, #tpu.memory_space<vmem>>, vector<8x32xf32>,
    %c48_111 = arith.constant 48 : index
    %c0_112 = arith.constant 0 : index
    %345 = vector.load %arg13[%c48_111, %c0_112] : memref<64x128xf32, #tpu.memory_space<vmem>>, vector<8x128xf32>
    %c0_113 = arith.constant 0 : index
    %c0_114 = arith.constant 0 : index
    %346 = vector.load %arg7[%c0_113, %c0_114] : memref<32x128xf32, #tpu.memory_space<vmem>>, vector<32x128xf32>
    %cst_115 = arith.constant dense<0.000000e+00> : vector<8x128xf32>
    %347 = tpu.matmul %343, %346, %cst_115 {dimension_numbers = #tpu.dot_dimension_numbers<[1], [0], [0], [1], [0, 0, 1, 1], [], []>} : vector<8x32xf32>, vector<32x128xf32>, vector<8x128xf32> -> vector<8x128xf32>
    %348 = arith.addf %345, %347 : vector<8x128xf32>
    %349 = arith.negf %348 : vector<8x128xf32>
    %350 = math.exp %349 : vector<8x128xf32>
    %cst_116 = arith.constant 1.000000e+00 : f32
    %351 = vector.broadcast %cst_116 : f32 to vector<8x128xf32>
    %352 = arith.addf %351, %350 : vector<8x128xf32>
    %353 = arith.divf %351, %352 : vector<8x128xf32>
    %354 = math.tanh %348 : vector<8x128xf32>
    %355 = vector.extract_strided_slice %353 {offsets = [0, 0], sizes = [8, 32], strides = [1, 1]} : vector<8x128xf32> to vector<8x32xf32>
    %356 = vector.extract_strided_slice %353 {offsets = [0, 32], sizes = [8, 32], strides = [1, 1]} : vector<8x128xf32> to vector<8x32xf32>
    %357 = vector.extract_strided_slice %354 {offsets = [0, 64], sizes = [8, 32], strides = [1, 1]} : vector<8x128xf32> to vector<8x32xf32>
    %358 = vector.extract_strided_slice %353 {offsets = [0, 96], sizes = [8, 32], strides = [1, 1]} : vector<8x128xf32> to vector<8x32xf32>
    %359 = arith.mulf %356, %341 : vector<8x32xf32>
    %360 = arith.mulf %355, %357 : vector<8x32xf32>
    %361 = arith.addf %359, %360 : vector<8x32xf32>
    %362 = math.tanh %361 : vector<8x32xf32>
    %363 = arith.mulf %358, %362 : vector<8x32xf32>
    %c48_117 = arith.constant 48 : index
    %c0_118 = arith.constant 0 : index
    %364 = vector.load %arg14[%c48_117, %c0_118] : memref<64x32xf32, #tpu.memory_space<vmem>>, vector<8x32xf32>
    tpu.vector_store %arg14[%c48_117, %c0_118], %363 {strides = array<i32>} : memref<64x32xf32, #tpu.memory_space<vmem>>, vector<8x32xf32>,
    %c56_119 = arith.constant 56 : index
    %c0_120 = arith.constant 0 : index
    %365 = vector.load %arg13[%c56_119, %c0_120] : memref<64x128xf32, #tpu.memory_space<vmem>>, vector<8x128xf32>
    %c0_121 = arith.constant 0 : index
    %c0_122 = arith.constant 0 : index
    %366 = vector.load %arg7[%c0_121, %c0_122] : memref<32x128xf32, #tpu.memory_space<vmem>>, vector<32x128xf32>
    %cst_123 = arith.constant dense<0.000000e+00> : vector<8x128xf32>
    %367 = tpu.matmul %363, %366, %cst_123 {dimension_numbers = #tpu.dot_dimension_numbers<[1], [0], [0], [1], [0, 0, 1, 1], [], []>} : vector<8x32xf32>, vector<32x128xf32>, vector<8x128xf32> -> vector<8x128xf32>
    %368 = arith.addf %365, %367 : vector<8x128xf32>
    %369 = arith.negf %368 : vector<8x128xf32>
    %370 = math.exp %369 : vector<8x128xf32>
    %cst_124 = arith.constant 1.000000e+00 : f32
    %371 = vector.broadcast %cst_124 : f32 to vector<8x128xf32>
    %372 = arith.addf %371, %370 : vector<8x128xf32>
    %373 = arith.divf %371, %372 : vector<8x128xf32>
    %374 = math.tanh %368 : vector<8x128xf32>
    %375 = vector.extract_strided_slice %373 {offsets = [0, 0], sizes = [8, 32], strides = [1, 1]} : vector<8x128xf32> to vector<8x32xf32>
    %376 = vector.extract_strided_slice %373 {offsets = [0, 32], sizes = [8, 32], strides = [1, 1]} : vector<8x128xf32> to vector<8x32xf32>
    %377 = vector.extract_strided_slice %374 {offsets = [0, 64], sizes = [8, 32], strides = [1, 1]} : vector<8x128xf32> to vector<8x32xf32>
    %378 = vector.extract_strided_slice %373 {offsets = [0, 96], sizes = [8, 32], strides = [1, 1]} : vector<8x128xf32> to vector<8x32xf32>
    %379 = arith.mulf %376, %361 : vector<8x32xf32>
    %380 = arith.mulf %375, %377 : vector<8x32xf32>
    %381 = arith.addf %379, %380 : vector<8x32xf32>
    %382 = math.tanh %381 : vector<8x32xf32>
    %383 = arith.mulf %378, %382 : vector<8x32xf32>
    %c56_125 = arith.constant 56 : index
    %c0_126 = arith.constant 0 : index
    %384 = vector.load %arg14[%c56_125, %c0_126] : memref<64x32xf32, #tpu.memory_space<vmem>>, vector<8x32xf32>
    tpu.vector_store %arg14[%c56_125, %c0_126], %383 {strides = array<i32>} : memref<64x32xf32, #tpu.memory_space<vmem>>, vector<8x32xf32>,
    %c0_127 = arith.constant 0 : index
    %c0_128 = arith.constant 0 : index
    %385 = vector.load %arg14[%c0_127, %c0_128] : memref<64x32xf32, #tpu.memory_space<vmem>>, vector<64x32xf32>
    %c0_129 = arith.constant 0 : index
    %c0_130 = arith.constant 0 : index
    %386 = vector.load %arg9[%c0_129, %c0_130] : memref<32x128xf32, #tpu.memory_space<vmem>>, vector<32x128xf32>
    %cst_131 = arith.constant dense<0.000000e+00> : vector<64x128xf32>
    %387 = tpu.matmul %385, %386, %cst_131 {dimension_numbers = #tpu.dot_dimension_numbers<[1], [0], [0], [1], [0, 0, 1, 1], [], []>} : vector<64x32xf32>, vector<32x128xf32>, vector<64x128xf32> -> vector<64x128xf32>
    %c0_132 = arith.constant 0 : index
    %c0_133 = arith.constant 0 : index
    %388 = vector.load %arg10[%c0_132, %c0_133] : memref<1x128xf32, #tpu.memory_space<vmem>>, vector<1x128xf32>
    %389 = vector.broadcast %388 : vector<1x128xf32> to vector<64x128xf32>
    %390 = arith.addf %387, %389 : vector<64x128xf32>
    %c0_134 = arith.constant 0 : index
    %c0_135 = arith.constant 0 : index
    %391 = vector.load %arg11[%c0_134, %c0_135] : memref<64x128xf32, #tpu.memory_space<vmem>>, vector<64x128xf32>
    tpu.vector_store %arg11[%c0_134, %c0_135], %390 {strides = array<i32>} : memref<64x128xf32, #tpu.memory_space<vmem>>, vector<64x128xf32>,
    return
  }
}

</mosaic_0001>

<llo_original>
// kernel: tpu_custom_call.1
$region0: #{tpu_custom_call.1}
  #allocation0 [shape = 'u32[]', space=smem, size = 0x4, offset = 0x4, fixed_abs, tag = 'smem constant byte address 0x4 - core index']
  #allocation1 [shape = 'u32[144,128]{1,0:T(1,128)}', space=vmem, size = 0x12000, scoped, tag = 'internal scratch']
  #allocation2 [shape = 'f32[64,128]{1,0:T(8,128)}', space=vmem, size = 0x8000, scoped, tag = 'scratch operand']
  #allocation3 [shape = 'f32[64,128]{1,0:T(8,128)}', space=vmem, size = 0x8000, scoped, tag = 'scratch operand']
  #allocation4 [shape = 'f32[64,32]{1,0:T(8,128)}', space=vmem, size = 0x8000, scoped, tag = 'scratch operand']
  %s0 = inlined_call_operand.vmem [shape: f32[64,16], index: 0, kind: input, shape index: {}]
  %s1 = inlined_call_operand.vmem [shape: f32[64,1], index: 1, kind: input, shape index: {}]
  %s2 = inlined_call_operand.vmem [shape: f32[64,16], index: 2, kind: input, shape index: {}]
  %s3 = inlined_call_operand.vmem [shape: f32[16,128], index: 3, kind: input, shape index: {}]
  %s4 = inlined_call_operand.vmem [shape: f32[32,128], index: 4, kind: input, shape index: {}]
  %s5 = inlined_call_operand.vmem [shape: f32[1,128], index: 5, kind: input, shape index: {}]
  %s6 = inlined_call_operand.vmem [shape: f32[16,128], index: 6, kind: input, shape index: {}]
  %s7 = inlined_call_operand.vmem [shape: f32[32,128], index: 7, kind: input, shape index: {}]
  %s8 = inlined_call_operand.vmem [shape: f32[1,128], index: 8, kind: input, shape index: {}]
  %s9 = inlined_call_operand.vmem [shape: f32[32,128], index: 9, kind: input, shape index: {}]
  %s10 = inlined_call_operand.vmem [shape: f32[1,128], index: 10, kind: input, shape index: {}]
  %s11 = inlined_call_operand.hbm [shape: f32[64,128], index: 11, kind: output, shape index: {}]
  %s12 = sld [smem:[#allocation0]]
  $region54: #{tpu_custom_call.1} parent=0
    _
  %s14 = ssub.s32 1, %s12
  %s15 = scalar_select 0, %s14, %s12
  $region1: #{tpu_custom_call.1} parent=0
    #allocation5 [shape = 'u8[32768]{0}', space=vmem, size = 0x8000, scoped, tag = 'output window, operand 0, single buffered']
    #allocation6 [shape = 's32[1]{0}', space=sflag, size = 0x4, scoped, tag = 'scoped memory for tpu_custom_call.1']
    %16 = vsyncpa [#allocation6], 0
    // Predicated region
    $region2: #{tpu_custom_call.1} parent=1 // pred_check
      _
    $region3: #{tpu_custom_call.1} parent=1 // pred_check_branch
      %18 = sbr.rel (0) target = $region5
    $region4: #{tpu_custom_call.1} parent=1 // pred_region
      _
    $region5: #{tpu_custom_call.1} parent=1 // pred_fallthru
      _
    // Predicated region
    $region6: #{tpu_custom_call.1} parent=1 // pred_check
      _
    $region7: #{tpu_custom_call.1} parent=1 // pred_check_branch
      %20 = sbr.rel (0) target = $region9
    $region8: #{tpu_custom_call.1} parent=1 // pred_region
      _
    $region9: #{tpu_custom_call.1} parent=1 // pred_fallthru
      _
    // Predicated region
    $region10: #{tpu_custom_call.1} parent=1 // pred_check
      _
    $region11: #{tpu_custom_call.1} parent=1 // pred_check_branch
      %22 = sbr.rel (0) target = $region13
    $region12: #{tpu_custom_call.1} parent=1 // pred_region
      _
    $region13: #{tpu_custom_call.1} parent=1 // pred_fallthru
      _
    // Predicated region
    $region14: #{tpu_custom_call.1} parent=1 // pred_check
      _
    $region15: #{tpu_custom_call.1} parent=1 // pred_check_branch
      %24 = sbr.rel (0) target = $region17
    $region16: #{tpu_custom_call.1} parent=1 // pred_region
      _
    $region17: #{tpu_custom_call.1} parent=1 // pred_fallthru
      _
    // Predicated region
    $region18: #{tpu_custom_call.1} parent=1 // pred_check
      _
    $region19: #{tpu_custom_call.1} parent=1 // pred_check_branch
      %26 = sbr.rel (0) target = $region21
    $region20: #{tpu_custom_call.1} parent=1 // pred_region
      _
    $region21: #{tpu_custom_call.1} parent=1 // pred_fallthru
      _
    // Predicated region
    $region22: #{tpu_custom_call.1} parent=1 // pred_check
      _
    $region23: #{tpu_custom_call.1} parent=1 // pred_check_branch
      %28 = sbr.rel (0) target = $region25
    $region24: #{tpu_custom_call.1} parent=1 // pred_region
      _
    $region25: #{tpu_custom_call.1} parent=1 // pred_fallthru
      _
    // Predicated region
    $region26: #{tpu_custom_call.1} parent=1 // pred_check
      _
    $region27: #{tpu_custom_call.1} parent=1 // pred_check_branch
      %30 = sbr.rel (0) target = $region29
    $region28: #{tpu_custom_call.1} parent=1 // pred_region
      _
    $region29: #{tpu_custom_call.1} parent=1 // pred_fallthru
      _
    // Predicated region
    $region30: #{tpu_custom_call.1} parent=1 // pred_check
      _
    $region31: #{tpu_custom_call.1} parent=1 // pred_check_branch
      %32 = sbr.rel (0) target = $region33
    $region32: #{tpu_custom_call.1} parent=1 // pred_region
      _
    $region33: #{tpu_custom_call.1} parent=1 // pred_fallthru
      _
    // Predicated region
    $region34: #{tpu_custom_call.1} parent=1 // pred_check
      _
    $region35: #{tpu_custom_call.1} parent=1 // pred_check_branch
      %34 = sbr.rel (0) target = $region37
    $region36: #{tpu_custom_call.1} parent=1 // pred_region
      _
    $region37: #{tpu_custom_call.1} parent=1 // pred_fallthru
      _
    // Predicated region
    $region38: #{tpu_custom_call.1} parent=1 // pred_check
      _
    $region39: #{tpu_custom_call.1} parent=1 // pred_check_branch
      %36 = sbr.rel (0) target = $region41
    $region40: #{tpu_custom_call.1} parent=1 // pred_region
      _
    $region41: #{tpu_custom_call.1} parent=1 // pred_fallthru
      _
    // Predicated region
    $region42: #{tpu_custom_call.1} parent=1 // pred_check
      _
    $region43: #{tpu_custom_call.1} parent=1 // pred_check_branch
      %38 = sbr.rel (0) target = $region45
    $region44: #{tpu_custom_call.1} parent=1 // pred_region
      _
    $region45: #{tpu_custom_call.1} parent=1 // pred_fallthru
      _
    %v39 = vld [vmem:[%s0] sm:$0xff]
    %v40 = vld [vmem:[%s0 + $0x8] sm:$0xff]
    %v41 = vld [vmem:[%s0 + $0x10] sm:$0xff]
    %v42 = vld [vmem:[%s0 + $0x18] sm:$0xff]
    %v43 = vld [vmem:[%s0 + $0x20] sm:$0xff]
    %v44 = vld [vmem:[%s0 + $0x28] sm:$0xff]
    %v45 = vld [vmem:[%s0 + $0x30] sm:$0xff]
    %v46 = vld [vmem:[%s0 + $0x38] sm:$0xff]
    %v47 = vld [vmem:[%s3] sm:$0xff]
    %v48 = vld [vmem:[%s3 + $0x8] sm:$0xff]
    %v49 = vld [vmem:[%s5] sm:$0x1]
    %v51 = vlaneseq
    %v52 = vshrl.u32 %v51, 7
    %v53 = vsub.s32 0, %v52
    %v54 = vrot.slane %v49, %v53
    %vm56 = vcmask 130048
    %v58 = vsel %vm56, %v39, 0
    %v61 = vsel %vm56, %v40, 0
    %v64 = vsel %vm56, %v41, 0
    %v67 = vsel %vm56, %v42, 0
    %v70 = vsel %vm56, %v43, 0
    %v73 = vsel %vm56, %v44, 0
    %v76 = vsel %vm56, %v45, 0
    %v79 = vsel %vm56, %v46, 0
    %81 = vmatprep.subr.mxu0 0.0
    %82 = vmatpush1.msra.mxu0 %v47
    %83 = vmatprep.subr.mxu0 0.0
    %84 = vmatpush1.msra.mxu0 %v48
    %85 = vmatprep.subr.mxu0 0.0
    %86 = vmatpush1.msra.mxu0 0.0
    %87 = vmatprep.subr.mxu0 0.0
    %88 = vmatpush1.msra.mxu0 0.0
    %89 = vmatprep.subr.mxu0 0.0
    %90 = vmatpush1.msra.mxu0 0.0
    %91 = vmatprep.subr.mxu0 0.0
    %92 = vmatpush1.msra.mxu0 0.0
    %93 = vmatprep.subr.mxu0 0.0
    %94 = vmatpush1.msra.mxu0 0.0
    %95 = vmatprep.subr.mxu0 0.0
    %96 = vmatpush1.msra.mxu0 0.0
    %97 = vmatprep.subr.mxu0 0.0
    %98 = vmatpush1.msra.mxu0 0.0
    %99 = vmatprep.subr.mxu0 0.0
    %100 = vmatpush1.msra.mxu0 0.0
    %101 = vmatprep.subr.mxu0 0.0
    %102 = vmatpush1.msra.mxu0 0.0
    %103 = vmatprep.subr.mxu0 0.0
    %104 = vmatpush1.msra.mxu0 0.0
    %105 = vmatprep.subr.mxu0 0.0
    %106 = vmatpush1.msra.mxu0 0.0
    %107 = vmatprep.subr.mxu0 0.0
    %108 = vmatpush1.msra.mxu0 0.0
    %109 = vmatprep.subr.mxu0 0.0
    %110 = vmatpush1.msra.mxu0 0.0
    %111 = vmatprep.subr.mxu0 0.0
    %112 = vmatpush1.msra.mxu0 0.0
    %113 = vmatprep.subr.mxu0 0.0
    %114 = vmatpush1.msra.mxu0 0.0
    %115 = vmatprep.subr.mxu0 0.0
    %116 = vmatpush1.msra.mxu0 0.0
    %117 = vmatprep.subr.mxu0 0.0
    %118 = vmatpush1.msra.mxu0 0.0
    %119 = vmatprep.subr.mxu0 0.0
    %120 = vmatpush1.msra.mxu0 0.0
    %121 = vmatprep.subr.mxu0 0.0
    %122 = vmatpush1.msra.mxu0 0.0
    %123 = vmatprep.subr.mxu0 0.0
    %124 = vmatpush1.msra.mxu0 0.0
    %125 = vmatprep.subr.mxu0 0.0
    %126 = vmatpush1.msra.mxu0 0.0
    %127 = vmatprep.subr.mxu0 0.0
    %128 = vmatpush1.msra.mxu0 0.0
    %129 = vmatprep.subr.mxu0 0.0
    %130 = vmatpush1.msra.mxu0 0.0
    %131 = vmatprep.subr.mxu0 0.0
    %132 = vmatpush1.msra.mxu0 0.0
    %133 = vmatprep.subr.mxu0 0.0
    %134 = vmatpush1.msra.mxu0 0.0
    %135 = vmatprep.subr.mxu0 0.0
    %136 = vmatpush1.msra.mxu0 0.0
    %137 = vmatprep.subr.mxu0 0.0
    %138 = vmatpush1.msra.mxu0 0.0
    %139 = vmatprep.subr.mxu0 0.0
    %140 = vmatpush1.msra.mxu0 0.0
    %141 = vmatprep.subr.mxu0 0.0
    %142 = vmatpush1.msra.mxu0 0.0
    %143 = vmatprep.subr.mxu0 0.0
    %144 = vmatpush1.msra.mxu0 0.0
    %145 = vmatprep.mubr.f32.mxu0 0.0
    %146 = vmatmul.mubr.f32.gmra.mrb[0].mxu0 %v58
    %v147 = vpop.f32.mrb[0].mxu0
    %v148 = vadd.f32 %v54, %v147
    %v149 = vpop.f32.mrb[0].mxu0
    %150 = vmatprep.mubr.f32.mxu0 0.0
    %151 = vmatmul.mubr.f32.gmra.mrb[0].mxu0 %v61
    %v152 = vpop.f32.mrb[0].mxu0
    %v153 = vadd.f32 %v54, %v152
    %v154 = vpop.f32.mrb[0].mxu0
    %155 = vmatprep.mubr.f32.mxu0 0.0
    %156 = vmatmul.mubr.f32.gmra.mrb[0].mxu0 %v64
    %v157 = vpop.f32.mrb[0].mxu0
    %v158 = vadd.f32 %v54, %v157
    %v159 = vpop.f32.mrb[0].mxu0
    %160 = vmatprep.mubr.f32.mxu0 0.0
    %161 = vmatmul.mubr.f32.gmra.mrb[0].mxu0 %v67
    %v162 = vpop.f32.mrb[0].mxu0
    %v163 = vadd.f32 %v54, %v162
    %v164 = vpop.f32.mrb[0].mxu0
    %165 = vmatprep.mubr.f32.mxu0 0.0
    %166 = vmatmul.mubr.f32.gmra.mrb[0].mxu0 %v70
    %v167 = vpop.f32.mrb[0].mxu0
    %v168 = vadd.f32 %v54, %v167
    %v169 = vpop.f32.mrb[0].mxu0
    %170 = vmatprep.mubr.f32.mxu0 0.0
    %171 = vmatmul.mubr.f32.gmra.mrb[0].mxu0 %v73
    %v172 = vpop.f32.mrb[0].mxu0
    %v173 = vadd.f32 %v54, %v172
    %v174 = vpop.f32.mrb[0].mxu0
    %175 = vmatprep.mubr.f32.mxu0 0.0
    %176 = vmatmul.mubr.f32.gmra.mrb[0].mxu0 %v76
    %v177 = vpop.f32.mrb[0].mxu0
    %v178 = vadd.f32 %v54, %v177
    %v179 = vpop.f32.mrb[0].mxu0
    %180 = vmatprep.mubr.f32.mxu0 0.0
    %181 = vmatmul.mubr.f32.gmra.mrb[0].mxu0 %v79
    %v182 = vpop.f32.mrb[0].mxu0
    %v183 = vadd.f32 %v54, %v182
    %v184 = vpop.f32.mrb[0].mxu0
    %185 = vdwg.mxu0
    %186 = vst [vmem:[#allocation2] sm:$0xff] %v148
    %187 = vst [vmem:[#allocation2 + $0x8] sm:$0xff] %v153
    %188 = vst [vmem:[#allocation2 + $0x10] sm:$0xff] %v158
    %189 = vst [vmem:[#allocation2 + $0x18] sm:$0xff] %v163
    %190 = vst [vmem:[#allocation2 + $0x20] sm:$0xff] %v168
    %191 = vst [vmem:[#allocation2 + $0x28] sm:$0xff] %v173
    %192 = vst [vmem:[#allocation2 + $0x30] sm:$0xff] %v178
    %193 = vst [vmem:[#allocation2 + $0x38] sm:$0xff] %v183
    %v194 = vld [vmem:[%s2] sm:$0xff]
    %v195 = vld [vmem:[%s2 + $0x8] sm:$0xff]
    %v196 = vld [vmem:[%s2 + $0x10] sm:$0xff]
    %v197 = vld [vmem:[%s2 + $0x18] sm:$0xff]
    %v198 = vld [vmem:[%s2 + $0x20] sm:$0xff]
    %v199 = vld [vmem:[%s2 + $0x28] sm:$0xff]
    %v200 = vld [vmem:[%s2 + $0x30] sm:$0xff]
    %v201 = vld [vmem:[%s2 + $0x38] sm:$0xff]
    %v202 = vld [vmem:[%s6] sm:$0xff]
    %v203 = vld [vmem:[%s6 + $0x8] sm:$0xff]
    %v204 = vld [vmem:[%s8] sm:$0x1]
    %v206 = vlaneseq
    %v207 = vshrl.u32 %v206, 7
    %v208 = vsub.s32 0, %v207
    %v209 = vrot.slane %v204, %v208
    %v212 = vsel %vm56, %v194, 0
    %v215 = vsel %vm56, %v195, 0
    %v218 = vsel %vm56, %v196, 0
    %v221 = vsel %vm56, %v197, 0
    %v224 = vsel %vm56, %v198, 0
    %v227 = vsel %vm56, %v199, 0
    %v230 = vsel %vm56, %v200, 0
    %v233 = vsel %vm56, %v201, 0
    %235 = vmatprep.subr.mxu0 0.0
    %236 = vmatpush1.msra.mxu0 %v202
    %237 = vmatprep.subr.mxu0 0.0
    %238 = vmatpush1.msra.mxu0 %v203
    %239 = vmatprep.subr.mxu0 0.0
    %240 = vmatpush1.msra.mxu0 0.0
    %241 = vmatprep.subr.mxu0 0.0
    %242 = vmatpush1.msra.mxu0 0.0
    %243 = vmatprep.subr.mxu0 0.0
    %244 = vmatpush1.msra.mxu0 0.0
    %245 = vmatprep.subr.mxu0 0.0
    %246 = vmatpush1.msra.mxu0 0.0
    %247 = vmatprep.subr.mxu0 0.0
    %248 = vmatpush1.msra.mxu0 0.0
    %249 = vmatprep.subr.mxu0 0.0
    %250 = vmatpush1.msra.mxu0 0.0
    %251 = vmatprep.subr.mxu0 0.0
    %252 = vmatpush1.msra.mxu0 0.0
    %253 = vmatprep.subr.mxu0 0.0
    %254 = vmatpush1.msra.mxu0 0.0
    %255 = vmatprep.subr.mxu0 0.0
    %256 = vmatpush1.msra.mxu0 0.0
    %257 = vmatprep.subr.mxu0 0.0
    %258 = vmatpush1.msra.mxu0 0.0
    %259 = vmatprep.subr.mxu0 0.0
    %260 = vmatpush1.msra.mxu0 0.0
    %261 = vmatprep.subr.mxu0 0.0
    %262 = vmatpush1.msra.mxu0 0.0
    %263 = vmatprep.subr.mxu0 0.0
    %264 = vmatpush1.msra.mxu0 0.0
    %265 = vmatprep.subr.mxu0 0.0
    %266 = vmatpush1.msra.mxu0 0.0
    %267 = vmatprep.subr.mxu0 0.0
    %268 = vmatpush1.msra.mxu0 0.0
    %269 = vmatprep.subr.mxu0 0.0
    %270 = vmatpush1.msra.mxu0 0.0
    %271 = vmatprep.subr.mxu0 0.0
    %272 = vmatpush1.msra.mxu0 0.0
    %273 = vmatprep.subr.mxu0 0.0
    %274 = vmatpush1.msra.mxu0 0.0
    %275 = vmatprep.subr.mxu0 0.0
    %276 = vmatpush1.msra.mxu0 0.0
    %277 = vmatprep.subr.mxu0 0.0
    %278 = vmatpush1.msra.mxu0 0.0
    %279 = vmatprep.subr.mxu0 0.0
    %280 = vmatpush1.msra.mxu0 0.0
    %281 = vmatprep.subr.mxu0 0.0
    %282 = vmatpush1.msra.mxu0 0.0
    %283 = vmatprep.subr.mxu0 0.0
    %284 = vmatpush1.msra.mxu0 0.0
    %285 = vmatprep.subr.mxu0 0.0
    %286 = vmatpush1.msra.mxu0 0.0
    %287 = vmatprep.subr.mxu0 0.0
    %288 = vmatpush1.msra.mxu0 0.0
    %289 = vmatprep.subr.mxu0 0.0
    %290 = vmatpush1.msra.mxu0 0.0
    %291 = vmatprep.subr.mxu0 0.0
    %292 = vmatpush1.msra.mxu0 0.0
    %293 = vmatprep.subr.mxu0 0.0
    %294 = vmatpush1.msra.mxu0 0.0
    %295 = vmatprep.subr.mxu0 0.0
    %296 = vmatpush1.msra.mxu0 0.0
    %297 = vmatprep.subr.mxu0 0.0
    %298 = vmatpush1.msra.mxu0 0.0
    %299 = vmatprep.mubr.f32.mxu0 0.0
    %300 = vmatmul.mubr.f32.gmra.mrb[0].mxu0 %v212
    %v301 = vpop.f32.mrb[0].mxu0
    %v302 = vadd.f32 %v209, %v301
    %v303 = vpop.f32.mrb[0].mxu0
    %304 = vmatprep.mubr.f32.mxu0 0.0
    %305 = vmatmul.mubr.f32.gmra.mrb[0].mxu0 %v215
    %v306 = vpop.f32.mrb[0].mxu0
    %v307 = vadd.f32 %v209, %v306
    %v308 = vpop.f32.mrb[0].mxu0
    %309 = vmatprep.mubr.f32.mxu0 0.0
    %310 = vmatmul.mubr.f32.gmra.mrb[0].mxu0 %v218
    %v311 = vpop.f32.mrb[0].mxu0
    %v312 = vadd.f32 %v209, %v311
    %v313 = vpop.f32.mrb[0].mxu0
    %314 = vmatprep.mubr.f32.mxu0 0.0
    %315 = vmatmul.mubr.f32.gmra.mrb[0].mxu0 %v221
    %v316 = vpop.f32.mrb[0].mxu0
    %v317 = vadd.f32 %v209, %v316
    %v318 = vpop.f32.mrb[0].mxu0
    %319 = vmatprep.mubr.f32.mxu0 0.0
    %320 = vmatmul.mubr.f32.gmra.mrb[0].mxu0 %v224
    %v321 = vpop.f32.mrb[0].mxu0
    %v322 = vadd.f32 %v209, %v321
    %v323 = vpop.f32.mrb[0].mxu0
    %324 = vmatprep.mubr.f32.mxu0 0.0
    %325 = vmatmul.mubr.f32.gmra.mrb[0].mxu0 %v227
    %v326 = vpop.f32.mrb[0].mxu0
    %v327 = vadd.f32 %v209, %v326
    %v328 = vpop.f32.mrb[0].mxu0
    %329 = vmatprep.mubr.f32.mxu0 0.0
    %330 = vmatmul.mubr.f32.gmra.mrb[0].mxu0 %v230
    %v331 = vpop.f32.mrb[0].mxu0
    %v332 = vadd.f32 %v209, %v331
    %v333 = vpop.f32.mrb[0].mxu0
    %334 = vmatprep.mubr.f32.mxu0 0.0
    %335 = vmatmul.mubr.f32.gmra.mrb[0].mxu0 %v233
    %v336 = vpop.f32.mrb[0].mxu0
    %v337 = vadd.f32 %v209, %v336
    %v338 = vpop.f32.mrb[0].mxu0
    %339 = vdwg.mxu0
    %340 = vst [vmem:[#allocation3] sm:$0xff] %v302
    %341 = vst [vmem:[#allocation3 + $0x8] sm:$0xff] %v307
    %342 = vst [vmem:[#allocation3 + $0x10] sm:$0xff] %v312
    %343 = vst [vmem:[#allocation3 + $0x18] sm:$0xff] %v317
    %344 = vst [vmem:[#allocation3 + $0x20] sm:$0xff] %v322
    %345 = vst [vmem:[#allocation3 + $0x28] sm:$0xff] %v327
    %346 = vst [vmem:[#allocation3 + $0x30] sm:$0xff] %v332
    %347 = vst [vmem:[#allocation3 + $0x38] sm:$0xff] %v337
    %v348 = vld [vmem:[%s1] sm:$0xff]
    %v349 = vld [vmem:[%s1 + $0x8] sm:$0xff]
    %v350 = vld [vmem:[%s1 + $0x10] sm:$0xff]
    %v351 = vld [vmem:[%s1 + $0x18] sm:$0xff]
    %v352 = vld [vmem:[%s1 + $0x20] sm:$0xff]
    %v353 = vld [vmem:[%s1 + $0x28] sm:$0xff]
    %v354 = vld [vmem:[%s1 + $0x30] sm:$0xff]
    %v355 = vld [vmem:[%s1 + $0x38] sm:$0xff]
    %vm356 = vcmp.gt.f32.partialorder %v348, 0.5
    %vm357 = vcmp.gt.f32.partialorder %v349, 0.5
    %vm358 = vcmp.gt.f32.partialorder %v350, 0.5
    %vm359 = vcmp.gt.f32.partialorder %v351, 0.5
    %vm360 = vcmp.gt.f32.partialorder %v352, 0.5
    %vm361 = vcmp.gt.f32.partialorder %v353, 0.5
    %vm362 = vcmp.gt.f32.partialorder %v354, 0.5
    %vm363 = vcmp.gt.f32.partialorder %v355, 0.5
    %v364 = vld [vmem:[#allocation2] sm:$0xff]
    %v365 = vld [vmem:[%s4] sm:$0xff]
    %v366 = vld [vmem:[%s4 + $0x8] sm:$0xff]
    %v367 = vld [vmem:[%s4 + $0x10] sm:$0xff]
    %v368 = vld [vmem:[%s4 + $0x18] sm:$0xff]
    %vm369 = vcmask 261120
    %v371 = vsel %vm369, 0.0, 0
    %373 = vmatprep.subr.mxu0 0.0
    %374 = vmatpush1.msra.mxu0 %v365
    %375 = vmatprep.subr.mxu0 0.0
    %376 = vmatpush1.msra.mxu0 %v366
    %377 = vmatprep.subr.mxu0 0.0
    %378 = vmatpush1.msra.mxu0 %v367
    %379 = vmatprep.subr.mxu0 0.0
    %380 = vmatpush1.msra.mxu0 %v368
    %381 = vmatprep.subr.mxu0 0.0
    %382 = vmatpush1.msra.mxu0 0.0
    %383 = vmatprep.subr.mxu0 0.0
    %384 = vmatpush1.msra.mxu0 0.0
    %385 = vmatprep.subr.mxu0 0.0
    %386 = vmatpush1.msra.mxu0 0.0
    %387 = vmatprep.subr.mxu0 0.0
    %388 = vmatpush1.msra.mxu0 0.0
    %389 = vmatprep.subr.mxu0 0.0
    %390 = vmatpush1.msra.mxu0 0.0
    %391 = vmatprep.subr.mxu0 0.0
    %392 = vmatpush1.msra.mxu0 0.0
    %393 = vmatprep.subr.mxu0 0.0
    %394 = vmatpush1.msra.mxu0 0.0
    %395 = vmatprep.subr.mxu0 0.0
    %396 = vmatpush1.msra.mxu0 0.0
    %397 = vmatprep.subr.mxu0 0.0
    %398 = vmatpush1.msra.mxu0 0.0
    %399 = vmatprep.subr.mxu0 0.0
    %400 = vmatpush1.msra.mxu0 0.0
    %401 = vmatprep.subr.mxu0 0.0
    %402 = vmatpush1.msra.mxu0 0.0
    %403 = vmatprep.subr.mxu0 0.0
    %404 = vmatpush1.msra.mxu0 0.0
    %405 = vmatprep.subr.mxu0 0.0
    %406 = vmatpush1.msra.mxu0 0.0
    %407 = vmatprep.subr.mxu0 0.0
    %408 = vmatpush1.msra.mxu0 0.0
    %409 = vmatprep.subr.mxu0 0.0
    %410 = vmatpush1.msra.mxu0 0.0
    %411 = vmatprep.subr.mxu0 0.0
    %412 = vmatpush1.msra.mxu0 0.0
    %413 = vmatprep.subr.mxu0 0.0
    %414 = vmatpush1.msra.mxu0 0.0
    %415 = vmatprep.subr.mxu0 0.0
    %416 = vmatpush1.msra.mxu0 0.0
    %417 = vmatprep.subr.mxu0 0.0
    %418 = vmatpush1.msra.mxu0 0.0
    %419 = vmatprep.subr.mxu0 0.0
    %420 = vmatpush1.msra.mxu0 0.0
    %421 = vmatprep.subr.mxu0 0.0
    %422 = vmatpush1.msra.mxu0 0.0
    %423 = vmatprep.subr.mxu0 0.0
    %424 = vmatpush1.msra.mxu0 0.0
    %425 = vmatprep.subr.mxu0 0.0
    %426 = vmatpush1.msra.mxu0 0.0
    %427 = vmatprep.subr.mxu0 0.0
    %428 = vmatpush1.msra.mxu0 0.0
    %429 = vmatprep.subr.mxu0 0.0
    %430 = vmatpush1.msra.mxu0 0.0
    %431 = vmatprep.subr.mxu0 0.0
    %432 = vmatpush1.msra.mxu0 0.0
    %433 = vmatprep.subr.mxu0 0.0
    %434 = vmatpush1.msra.mxu0 0.0
    %435 = vmatprep.subr.mxu0 0.0
    %436 = vmatpush1.msra.mxu0 0.0
    %437 = vmatprep.mubr.f32.mxu0 0.0
    %438 = vmatmul.mubr.f32.gmra.mrb[0].mxu0 %v371
    %v439 = vpop.f32.mrb[0].mxu0
    %v440 = vadd.f32 0.0, %v439
    %v441 = vpop.f32.mrb[0].mxu0
    %442 = vdwg.mxu0
    %v443 = vadd.f32 %v364, %v440
    %v444 = vxor.u32 %v443, 2147483648
    %v445 = vmul.f32 %v444, 1.442695
    %v446 = vpow.pop %v445
    %v447 = vadd.f32 %v446, 1.0
    %v448 = vrcp.pop %v447
    %v449 = vmul.f32 1.0, %v448
    %v450 = vtanh.pop %v443
    %v451 = vmul.f32 %v449, 0.0
    %453 = vrot.lane.b32.xlu0 %v450, 64
    %v454 = vpop.permute.xlu0 %453
    %v456 = vmul.f32 %v449, %v454
    %458 = vrot.lane.b32.xlu0 %v456, 32
    %v459 = vpop.permute.xlu0 %458
    %v461 = vadd.f32 %v451, %v459
    %v462 = vtanh.pop %v461
    %464 = vrot.lane.b32.xlu0 %v462, 64
    %v465 = vpop.permute.xlu0 %464
    %v467 = vmul.f32 %v449, %v465
    %v468 = vsel %vm356, 1, 0
    %469 = vset.pattern.permute.xlu0 0
    %470 = vperm.xlu0 %469, %v468
    %v471 = vpop.permute.xlu0 %470
    %vm472 = vcmp.eq.s32.totalorder %v471, 1
    %v473 = vsel %vm472, %v467, 0.0
    %v474 = vsel %vm472, %v461, 0.0
    %v475 = vld [vmem:[#allocation2 + $0x8] sm:$0xff]
    %477 = vrot.lane.b32.xlu0 %v473, 32
    %v478 = vpop.permute.xlu0 %477
    %v479 = vsel %vm369, %v478, 0
    %481 = vmatprep.subr.mxu0 0.0
    %482 = vmatpush1.msra.mxu0 %v365
    %483 = vmatprep.subr.mxu0 0.0
    %484 = vmatpush1.msra.mxu0 %v366
    %485 = vmatprep.subr.mxu0 0.0
    %486 = vmatpush1.msra.mxu0 %v367
    %487 = vmatprep.subr.mxu0 0.0
    %488 = vmatpush1.msra.mxu0 %v368
    %489 = vmatprep.subr.mxu0 0.0
    %490 = vmatpush1.msra.mxu0 0.0
    %491 = vmatprep.subr.mxu0 0.0
    %492 = vmatpush1.msra.mxu0 0.0
    %493 = vmatprep.subr.mxu0 0.0
    %494 = vmatpush1.msra.mxu0 0.0
    %495 = vmatprep.subr.mxu0 0.0
    %496 = vmatpush1.msra.mxu0 0.0
    %497 = vmatprep.subr.mxu0 0.0
    %498 = vmatpush1.msra.mxu0 0.0
    %499 = vmatprep.subr.mxu0 0.0
    %500 = vmatpush1.msra.mxu0 0.0
    %501 = vmatprep.subr.mxu0 0.0
    %502 = vmatpush1.msra.mxu0 0.0
    %503 = vmatprep.subr.mxu0 0.0
    %504 = vmatpush1.msra.mxu0 0.0
    %505 = vmatprep.subr.mxu0 0.0
    %506 = vmatpush1.msra.mxu0 0.0
    %507 = vmatprep.subr.mxu0 0.0
    %508 = vmatpush1.msra.mxu0 0.0
    %509 = vmatprep.subr.mxu0 0.0
    %510 = vmatpush1.msra.mxu0 0.0
    %511 = vmatprep.subr.mxu0 0.0
    %512 = vmatpush1.msra.mxu0 0.0
    %513 = vmatprep.subr.mxu0 0.0
    %514 = vmatpush1.msra.mxu0 0.0
    %515 = vmatprep.subr.mxu0 0.0
    %516 = vmatpush1.msra.mxu0 0.0
    %517 = vmatprep.subr.mxu0 0.0
    %518 = vmatpush1.msra.mxu0 0.0
    %519 = vmatprep.subr.mxu0 0.0
    %520 = vmatpush1.msra.mxu0 0.0
    %521 = vmatprep.subr.mxu0 0.0
    %522 = vmatpush1.msra.mxu0 0.0
    %523 = vmatprep.subr.mxu0 0.0
    %524 = vmatpush1.msra.mxu0 0.0
    %525 = vmatprep.subr.mxu0 0.0
    %526 = vmatpush1.msra.mxu0 0.0
    %527 = vmatprep.subr.mxu0 0.0
    %528 = vmatpush1.msra.mxu0 0.0
    %529 = vmatprep.subr.mxu0 0.0
    %530 = vmatpush1.msra.mxu0 0.0
    %531 = vmatprep.subr.mxu0 0.0
    %532 = vmatpush1.msra.mxu0 0.0
    %533 = vmatprep.subr.mxu0 0.0
    %534 = vmatpush1.msra.mxu0 0.0
    %535 = vmatprep.subr.mxu0 0.0
    %536 = vmatpush1.msra.mxu0 0.0
    %537 = vmatprep.subr.mxu0 0.0
    %538 = vmatpush1.msra.mxu0 0.0
    %539 = vmatprep.subr.mxu0 0.0
    %540 = vmatpush1.msra.mxu0 0.0
    %541 = vmatprep.subr.mxu0 0.0
    %542 = vmatpush1.msra.mxu0 0.0
    %543 = vmatprep.subr.mxu0 0.0
    %544 = vmatpush1.msra.mxu0 0.0
    %545 = vmatprep.mubr.f32.mxu0 0.0
    %546 = vmatmul.mubr.f32.gmra.mrb[0].mxu0 %v479
    %v547 = vpop.f32.mrb[0].mxu0
    %v548 = vadd.f32 0.0, %v547
    %v549 = vpop.f32.mrb[0].mxu0
    %550 = vdwg.mxu0
    %v551 = vadd.f32 %v475, %v548
    %v552 = vxor.u32 %v551, 2147483648
    %v553 = vmul.f32 %v552, 1.442695
    %v554 = vpow.pop %v553
    %v555 = vadd.f32 %v554, 1.0
    %v556 = vrcp.pop %v555
    %v557 = vmul.f32 1.0, %v556
    %v558 = vtanh.pop %v551
    %v559 = vmul.f32 %v557, %v474
    %561 = vrot.lane.b32.xlu0 %v558, 64
    %v562 = vpop.permute.xlu0 %561
    %v564 = vmul.f32 %v557, %v562
    %566 = vrot.lane.b32.xlu0 %v564, 32
    %v567 = vpop.permute.xlu0 %566
    %v569 = vadd.f32 %v559, %v567
    %v570 = vtanh.pop %v569
    %572 = vrot.lane.b32.xlu0 %v570, 64
    %v573 = vpop.permute.xlu0 %572
    %v575 = vmul.f32 %v557, %v573
    %v576 = vsel %vm357, 1, 0
    %577 = vset.pattern.permute.xlu0 0
    %578 = vperm.xlu0 %577, %v576
    %v579 = vpop.permute.xlu0 %578
    %vm580 = vcmp.eq.s32.totalorder %v579, 1
    %v581 = vsel %vm580, %v575, %v473
    %v582 = vsel %vm580, %v569, %v474
    %v583 = vld [vmem:[#allocation2 + $0x10] sm:$0xff]
    %585 = vrot.lane.b32.xlu0 %v581, 32
    %v586 = vpop.permute.xlu0 %585
    %v587 = vsel %vm369, %v586, 0
    %589 = vmatprep.subr.mxu0 0.0
    %590 = vmatpush1.msra.mxu0 %v365
    %591 = vmatprep.subr.mxu0 0.0
    %592 = vmatpush1.msra.mxu0 %v366
    %593 = vmatprep.subr.mxu0 0.0
    %594 = vmatpush1.msra.mxu0 %v367
    %595 = vmatprep.subr.mxu0 0.0
    %596 = vmatpush1.msra.mxu0 %v368
    %597 = vmatprep.subr.mxu0 0.0
    %598 = vmatpush1.msra.mxu0 0.0
    %599 = vmatprep.subr.mxu0 0.0
    %600 = vmatpush1.msra.mxu0 0.0
    %601 = vmatprep.subr.mxu0 0.0
    %602 = vmatpush1.msra.mxu0 0.0
    %603 = vmatprep.subr.mxu0 0.0
    %604 = vmatpush1.msra.mxu0 0.0
    %605 = vmatprep.subr.mxu0 0.0
    %606 = vmatpush1.msra.mxu0 0.0
    %607 = vmatprep.subr.mxu0 0.0
    %608 = vmatpush1.msra.mxu0 0.0
    %609 = vmatprep.subr.mxu0 0.0
    %610 = vmatpush1.msra.mxu0 0.0
    %611 = vmatprep.subr.mxu0 0.0
    %612 = vmatpush1.msra.mxu0 0.0
    %613 = vmatprep.subr.mxu0 0.0
    %614 = vmatpush1.msra.mxu0 0.0
    %615 = vmatprep.subr.mxu0 0.0
    %616 = vmatpush1.msra.mxu0 0.0
    %617 = vmatprep.subr.mxu0 0.0
    %618 = vmatpush1.msra.mxu0 0.0
    %619 = vmatprep.subr.mxu0 0.0
    %620 = vmatpush1.msra.mxu0 0.0
    %621 = vmatprep.subr.mxu0 0.0
    %622 = vmatpush1.msra.mxu0 0.0
    %623 = vmatprep.subr.mxu0 0.0
    %624 = vmatpush1.msra.mxu0 0.0
    %625 = vmatprep.subr.mxu0 0.0
    %626 = vmatpush1.msra.mxu0 0.0
    %627 = vmatprep.subr.mxu0 0.0
    %628 = vmatpush1.msra.mxu0 0.0
    %629 = vmatprep.subr.mxu0 0.0
    %630 = vmatpush1.msra.mxu0 0.0
    %631 = vmatprep.subr.mxu0 0.0
    %632 = vmatpush1.msra.mxu0 0.0
    %633 = vmatprep.subr.mxu0 0.0
    %634 = vmatpush1.msra.mxu0 0.0
    %635 = vmatprep.subr.mxu0 0.0
    %636 = vmatpush1.msra.mxu0 0.0
    %637 = vmatprep.subr.mxu0 0.0
    %638 = vmatpush1.msra.mxu0 0.0
    %639 = vmatprep.subr.mxu0 0.0
    %640 = vmatpush1.msra.mxu0 0.0
    %641 = vmatprep.subr.mxu0 0.0
    %642 = vmatpush1.msra.mxu0 0.0
    %643 = vmatprep.subr.mxu0 0.0
    %644 = vmatpush1.msra.mxu0 0.0
    %645 = vmatprep.subr.mxu0 0.0
    %646 = vmatpush1.msra.mxu0 0.0
    %647 = vmatprep.subr.mxu0 0.0
    %648 = vmatpush1.msra.mxu0 0.0
    %649 = vmatprep.subr.mxu0 0.0
    %650 = vmatpush1.msra.mxu0 0.0
    %651 = vmatprep.subr.mxu0 0.0
    %652 = vmatpush1.msra.mxu0 0.0
    %653 = vmatprep.mubr.f32.mxu0 0.0
    %654 = vmatmul.mubr.f32.gmra.mrb[0].mxu0 %v587
    %v655 = vpop.f32.mrb[0].mxu0
    %v656 = vadd.f32 0.0, %v655
    %v657 = vpop.f32.mrb[0].mxu0
    %658 = vdwg.mxu0
    %v659 = vadd.f32 %v583, %v656
    %v660 = vxor.u32 %v659, 2147483648
    %v661 = vmul.f32 %v660, 1.442695
    %v662 = vpow.pop %v661
    %v663 = vadd.f32 %v662, 1.0
    %v664 = vrcp.pop %v663
    %v665 = vmul.f32 1.0, %v664
    %v666 = vtanh.pop %v659
    %v667 = vmul.f32 %v665, %v582
    %669 = vrot.lane.b32.xlu0 %v666, 64
    %v670 = vpop.permute.xlu0 %669
    %v672 = vmul.f32 %v665, %v670
    %674 = vrot.lane.b32.xlu0 %v672, 32
    %v675 = vpop.permute.xlu0 %674
    %v677 = vadd.f32 %v667, %v675
    %v678 = vtanh.pop %v677
    %680 = vrot.lane.b32.xlu0 %v678, 64
    %v681 = vpop.permute.xlu0 %680
    %v683 = vmul.f32 %v665, %v681
    %v684 = vsel %vm358, 1, 0
    %685 = vset.pattern.permute.xlu0 0
    %686 = vperm.xlu0 %685, %v684
    %v687 = vpop.permute.xlu0 %686
    %vm688 = vcmp.eq.s32.totalorder %v687, 1
    %v689 = vsel %vm688, %v683, %v581
    %v690 = vsel %vm688, %v677, %v582
    %v691 = vld [vmem:[#allocation2 + $0x18] sm:$0xff]
    %693 = vrot.lane.b32.xlu0 %v689, 32
    %v694 = vpop.permute.xlu0 %693
    %v695 = vsel %vm369, %v694, 0
    %697 = vmatprep.subr.mxu0 0.0
    %698 = vmatpush1.msra.mxu0 %v365
    %699 = vmatprep.subr.mxu0 0.0
    %700 = vmatpush1.msra.mxu0 %v366
    %701 = vmatprep.subr.mxu0 0.0
    %702 = vmatpush1.msra.mxu0 %v367
    %703 = vmatprep.subr.mxu0 0.0
    %704 = vmatpush1.msra.mxu0 %v368
    %705 = vmatprep.subr.mxu0 0.0
    %706 = vmatpush1.msra.mxu0 0.0
    %707 = vmatprep.subr.mxu0 0.0
    %708 = vmatpush1.msra.mxu0 0.0
    %709 = vmatprep.subr.mxu0 0.0
    %710 = vmatpush1.msra.mxu0 0.0
    %711 = vmatprep.subr.mxu0 0.0
    %712 = vmatpush1.msra.mxu0 0.0
    %713 = vmatprep.subr.mxu0 0.0
    %714 = vmatpush1.msra.mxu0 0.0
    %715 = vmatprep.subr.mxu0 0.0
    %716 = vmatpush1.msra.mxu0 0.0
    %717 = vmatprep.subr.mxu0 0.0
    %718 = vmatpush1.msra.mxu0 0.0
    %719 = vmatprep.subr.mxu0 0.0
    %720 = vmatpush1.msra.mxu0 0.0
    %721 = vmatprep.subr.mxu0 0.0
    %722 = vmatpush1.msra.mxu0 0.0
    %723 = vmatprep.subr.mxu0 0.0
    %724 = vmatpush1.msra.mxu0 0.0
    %725 = vmatprep.subr.mxu0 0.0
    %726 = vmatpush1.msra.mxu0 0.0
    %727 = vmatprep.subr.mxu0 0.0
    %728 = vmatpush1.msra.mxu0 0.0
    %729 = vmatprep.subr.mxu0 0.0
    %730 = vmatpush1.msra.mxu0 0.0
    %731 = vmatprep.subr.mxu0 0.0
    %732 = vmatpush1.msra.mxu0 0.0
    %733 = vmatprep.subr.mxu0 0.0
    %734 = vmatpush1.msra.mxu0 0.0
    %735 = vmatprep.subr.mxu0 0.0
    %736 = vmatpush1.msra.mxu0 0.0
    %737 = vmatprep.subr.mxu0 0.0
    %738 = vmatpush1.msra.mxu0 0.0
    %739 = vmatprep.subr.mxu0 0.0
    %740 = vmatpush1.msra.mxu0 0.0
    %741 = vmatprep.subr.mxu0 0.0
    %742 = vmatpush1.msra.mxu0 0.0
    %743 = vmatprep.subr.mxu0 0.0
    %744 = vmatpush1.msra.mxu0 0.0
    %745 = vmatprep.subr.mxu0 0.0
    %746 = vmatpush1.msra.mxu0 0.0
    %747 = vmatprep.subr.mxu0 0.0
    %748 = vmatpush1.msra.mxu0 0.0
    %749 = vmatprep.subr.mxu0 0.0
    %750 = vmatpush1.msra.mxu0 0.0
    %751 = vmatprep.subr.mxu0 0.0
    %752 = vmatpush1.msra.mxu0 0.0
    %753 = vmatprep.subr.mxu0 0.0
    %754 = vmatpush1.msra.mxu0 0.0
    %755 = vmatprep.subr.mxu0 0.0
    %756 = vmatpush1.msra.mxu0 0.0
    %757 = vmatprep.subr.mxu0 0.0
    %758 = vmatpush1.msra.mxu0 0.0
    %759 = vmatprep.subr.mxu0 0.0
    %760 = vmatpush1.msra.mxu0 0.0
    %761 = vmatprep.mubr.f32.mxu0 0.0
    %762 = vmatmul.mubr.f32.gmra.mrb[0].mxu0 %v695
    %v763 = vpop.f32.mrb[0].mxu0
    %v764 = vadd.f32 0.0, %v763
    %v765 = vpop.f32.mrb[0].mxu0
    %766 = vdwg.mxu0
    %v767 = vadd.f32 %v691, %v764
    %v768 = vxor.u32 %v767, 2147483648
    %v769 = vmul.f32 %v768, 1.442695
    %v770 = vpow.pop %v769
    %v771 = vadd.f32 %v770, 1.0
    %v772 = vrcp.pop %v771
    %v773 = vmul.f32 1.0, %v772
    %v774 = vtanh.pop %v767
    %v775 = vmul.f32 %v773, %v690
    %777 = vrot.lane.b32.xlu0 %v774, 64
    %v778 = vpop.permute.xlu0 %777
    %v780 = vmul.f32 %v773, %v778
    %782 = vrot.lane.b32.xlu0 %v780, 32
    %v783 = vpop.permute.xlu0 %782
    %v785 = vadd.f32 %v775, %v783
    %v786 = vtanh.pop %v785
    %788 = vrot.lane.b32.xlu0 %v786, 64
    %v789 = vpop.permute.xlu0 %788
    %v791 = vmul.f32 %v773, %v789
    %v792 = vsel %vm359, 1, 0
    %793 = vset.pattern.permute.xlu0 0
    %794 = vperm.xlu0 %793, %v792
    %v795 = vpop.permute.xlu0 %794
    %vm796 = vcmp.eq.s32.totalorder %v795, 1
    %v797 = vsel %vm796, %v791, %v689
    %v798 = vsel %vm796, %v785, %v690
    %v799 = vld [vmem:[#allocation2 + $0x20] sm:$0xff]
    %801 = vrot.lane.b32.xlu0 %v797, 32
    %v802 = vpop.permute.xlu0 %801
    %v803 = vsel %vm369, %v802, 0
    %805 = vmatprep.subr.mxu0 0.0
    %806 = vmatpush1.msra.mxu0 %v365
    %807 = vmatprep.subr.mxu0 0.0
    %808 = vmatpush1.msra.mxu0 %v366
    %809 = vmatprep.subr.mxu0 0.0
    %810 = vmatpush1.msra.mxu0 %v367
    %811 = vmatprep.subr.mxu0 0.0
    %812 = vmatpush1.msra.mxu0 %v368
    %813 = vmatprep.subr.mxu0 0.0
    %814 = vmatpush1.msra.mxu0 0.0
    %815 = vmatprep.subr.mxu0 0.0
    %816 = vmatpush1.msra.mxu0 0.0
    %817 = vmatprep.subr.mxu0 0.0
    %818 = vmatpush1.msra.mxu0 0.0
    %819 = vmatprep.subr.mxu0 0.0
    %820 = vmatpush1.msra.mxu0 0.0
    %821 = vmatprep.subr.mxu0 0.0
    %822 = vmatpush1.msra.mxu0 0.0
    %823 = vmatprep.subr.mxu0 0.0
    %824 = vmatpush1.msra.mxu0 0.0
    %825 = vmatprep.subr.mxu0 0.0
    %826 = vmatpush1.msra.mxu0 0.0
    %827 = vmatprep.subr.mxu0 0.0
    %828 = vmatpush1.msra.mxu0 0.0
    %829 = vmatprep.subr.mxu0 0.0
    %830 = vmatpush1.msra.mxu0 0.0
    %831 = vmatprep.subr.mxu0 0.0
    %832 = vmatpush1.msra.mxu0 0.0
    %833 = vmatprep.subr.mxu0 0.0
    %834 = vmatpush1.msra.mxu0 0.0
    %835 = vmatprep.subr.mxu0 0.0
    %836 = vmatpush1.msra.mxu0 0.0
    %837 = vmatprep.subr.mxu0 0.0
    %838 = vmatpush1.msra.mxu0 0.0
    %839 = vmatprep.subr.mxu0 0.0
    %840 = vmatpush1.msra.mxu0 0.0
    %841 = vmatprep.subr.mxu0 0.0
    %842 = vmatpush1.msra.mxu0 0.0
    %843 = vmatprep.subr.mxu0 0.0
    %844 = vmatpush1.msra.mxu0 0.0
    %845 = vmatprep.subr.mxu0 0.0
    %846 = vmatpush1.msra.mxu0 0.0
    %847 = vmatprep.subr.mxu0 0.0
    %848 = vmatpush1.msra.mxu0 0.0
    %849 = vmatprep.subr.mxu0 0.0
    %850 = vmatpush1.msra.mxu0 0.0
    %851 = vmatprep.subr.mxu0 0.0
    %852 = vmatpush1.msra.mxu0 0.0
    %853 = vmatprep.subr.mxu0 0.0
    %854 = vmatpush1.msra.mxu0 0.0
    %855 = vmatprep.subr.mxu0 0.0
    %856 = vmatpush1.msra.mxu0 0.0
    %857 = vmatprep.subr.mxu0 0.0
    %858 = vmatpush1.msra.mxu0 0.0
    %859 = vmatprep.subr.mxu0 0.0
    %860 = vmatpush1.msra.mxu0 0.0
    %861 = vmatprep.subr.mxu0 0.0
    %862 = vmatpush1.msra.mxu0 0.0
    %863 = vmatprep.subr.mxu0 0.0
    %864 = vmatpush1.msra.mxu0 0.0
    %865 = vmatprep.subr.mxu0 0.0
    %866 = vmatpush1.msra.mxu0 0.0
    %867 = vmatprep.subr.mxu0 0.0
    %868 = vmatpush1.msra.mxu0 0.0
    %869 = vmatprep.mubr.f32.mxu0 0.0
    %870 = vmatmul.mubr.f32.gmra.mrb[0].mxu0 %v803
    %v871 = vpop.f32.mrb[0].mxu0
    %v872 = vadd.f32 0.0, %v871
    %v873 = vpop.f32.mrb[0].mxu0
    %874 = vdwg.mxu0
    %v875 = vadd.f32 %v799, %v872
    %v876 = vxor.u32 %v875, 2147483648
    %v877 = vmul.f32 %v876, 1.442695
    %v878 = vpow.pop %v877
    %v879 = vadd.f32 %v878, 1.0
    %v880 = vrcp.pop %v879
    %v881 = vmul.f32 1.0, %v880
    %v882 = vtanh.pop %v875
    %v883 = vmul.f32 %v881, %v798
    %885 = vrot.lane.b32.xlu0 %v882, 64
    %v886 = vpop.permute.xlu0 %885
    %v888 = vmul.f32 %v881, %v886
    %890 = vrot.lane.b32.xlu0 %v888, 32
    %v891 = vpop.permute.xlu0 %890
    %v893 = vadd.f32 %v883, %v891
    %v894 = vtanh.pop %v893
    %896 = vrot.lane.b32.xlu0 %v894, 64
    %v897 = vpop.permute.xlu0 %896
    %v899 = vmul.f32 %v881, %v897
    %v900 = vsel %vm360, 1, 0
    %901 = vset.pattern.permute.xlu0 0
    %902 = vperm.xlu0 %901, %v900
    %v903 = vpop.permute.xlu0 %902
    %vm904 = vcmp.eq.s32.totalorder %v903, 1
    %v905 = vsel %vm904, %v899, %v797
    %v906 = vsel %vm904, %v893, %v798
    %v907 = vld [vmem:[#allocation2 + $0x28] sm:$0xff]
    %909 = vrot.lane.b32.xlu0 %v905, 32
    %v910 = vpop.permute.xlu0 %909
    %v911 = vsel %vm369, %v910, 0
    %913 = vmatprep.subr.mxu0 0.0
    %914 = vmatpush1.msra.mxu0 %v365
    %915 = vmatprep.subr.mxu0 0.0
    %916 = vmatpush1.msra.mxu0 %v366
    %917 = vmatprep.subr.mxu0 0.0
    %918 = vmatpush1.msra.mxu0 %v367
    %919 = vmatprep.subr.mxu0 0.0
    %920 = vmatpush1.msra.mxu0 %v368
    %921 = vmatprep.subr.mxu0 0.0
    %922 = vmatpush1.msra.mxu0 0.0
    %923 = vmatprep.subr.mxu0 0.0
    %924 = vmatpush1.msra.mxu0 0.0
    %925 = vmatprep.subr.mxu0 0.0
    %926 = vmatpush1.msra.mxu0 0.0
    %927 = vmatprep.subr.mxu0 0.0
    %928 = vmatpush1.msra.mxu0 0.0
    %929 = vmatprep.subr.mxu0 0.0
    %930 = vmatpush1.msra.mxu0 0.0
    %931 = vmatprep.subr.mxu0 0.0
    %932 = vmatpush1.msra.mxu0 0.0
    %933 = vmatprep.subr.mxu0 0.0
    %934 = vmatpush1.msra.mxu0 0.0
    %935 = vmatprep.subr.mxu0 0.0
    %936 = vmatpush1.msra.mxu0 0.0
    %937 = vmatprep.subr.mxu0 0.0
    %938 = vmatpush1.msra.mxu0 0.0
    %939 = vmatprep.subr.mxu0 0.0
    %940 = vmatpush1.msra.mxu0 0.0
    %941 = vmatprep.subr.mxu0 0.0
    %942 = vmatpush1.msra.mxu0 0.0
    %943 = vmatprep.subr.mxu0 0.0
    %944 = vmatpush1.msra.mxu0 0.0
    %945 = vmatprep.subr.mxu0 0.0
    %946 = vmatpush1.msra.mxu0 0.0
    %947 = vmatprep.subr.mxu0 0.0
    %948 = vmatpush1.msra.mxu0 0.0
    %949 = vmatprep.subr.mxu0 0.0
    %950 = vmatpush1.msra.mxu0 0.0
    %951 = vmatprep.subr.mxu0 0.0
    %952 = vmatpush1.msra.mxu0 0.0
    %953 = vmatprep.subr.mxu0 0.0
    %954 = vmatpush1.msra.mxu0 0.0
    %955 = vmatprep.subr.mxu0 0.0
    %956 = vmatpush1.msra.mxu0 0.0
    %957 = vmatprep.subr.mxu0 0.0
    %958 = vmatpush1.msra.mxu0 0.0
    %959 = vmatprep.subr.mxu0 0.0
    %960 = vmatpush1.msra.mxu0 0.0
    %961 = vmatprep.subr.mxu0 0.0
    %962 = vmatpush1.msra.mxu0 0.0
    %963 = vmatprep.subr.mxu0 0.0
    %964 = vmatpush1.msra.mxu0 0.0
    %965 = vmatprep.subr.mxu0 0.0
    %966 = vmatpush1.msra.mxu0 0.0
    %967 = vmatprep.subr.mxu0 0.0
    %968 = vmatpush1.msra.mxu0 0.0
    %969 = vmatprep.subr.mxu0 0.0
    %970 = vmatpush1.msra.mxu0 0.0
    %971 = vmatprep.subr.mxu0 0.0
    %972 = vmatpush1.msra.mxu0 0.0
    %973 = vmatprep.subr.mxu0 0.0
    %974 = vmatpush1.msra.mxu0 0.0
    %975 = vmatprep.subr.mxu0 0.0
    %976 = vmatpush1.msra.mxu0 0.0
    %977 = vmatprep.mubr.f32.mxu0 0.0
    %978 = vmatmul.mubr.f32.gmra.mrb[0].mxu0 %v911
    %v979 = vpop.f32.mrb[0].mxu0
    %v980 = vadd.f32 0.0, %v979
    %v981 = vpop.f32.mrb[0].mxu0
    %982 = vdwg.mxu0
    %v983 = vadd.f32 %v907, %v980
    %v984 = vxor.u32 %v983, 2147483648
    %v985 = vmul.f32 %v984, 1.442695
    %v986 = vpow.pop %v985
    %v987 = vadd.f32 %v986, 1.0
    %v988 = vrcp.pop %v987
    %v989 = vmul.f32 1.0, %v988
    %v990 = vtanh.pop %v983
    %v991 = vmul.f32 %v989, %v906
    %993 = vrot.lane.b32.xlu0 %v990, 64
    %v994 = vpop.permute.xlu0 %993
    %v996 = vmul.f32 %v989, %v994
    %998 = vrot.lane.b32.xlu0 %v996, 32
    %v999 = vpop.permute.xlu0 %998
    %v1001 = vadd.f32 %v991, %v999
    %v1002 = vtanh.pop %v1001
    %1004 = vrot.lane.b32.xlu0 %v1002, 64
    %v1005 = vpop.permute.xlu0 %1004
    %v1007 = vmul.f32 %v989, %v1005
    %v1008 = vsel %vm361, 1, 0
    %1009 = vset.pattern.permute.xlu0 0
    %1010 = vperm.xlu0 %1009, %v1008
    %v1011 = vpop.permute.xlu0 %1010
    %vm1012 = vcmp.eq.s32.totalorder %v1011, 1
    %v1013 = vsel %vm1012, %v1007, %v905
    %v1014 = vsel %vm1012, %v1001, %v906
    %v1015 = vld [vmem:[#allocation2 + $0x30] sm:$0xff]
    %1017 = vrot.lane.b32.xlu0 %v1013, 32
    %v1018 = vpop.permute.xlu0 %1017
    %v1019 = vsel %vm369, %v1018, 0
    %1021 = vmatprep.subr.mxu0 0.0
    %1022 = vmatpush1.msra.mxu0 %v365
    %1023 = vmatprep.subr.mxu0 0.0
    %1024 = vmatpush1.msra.mxu0 %v366
    %1025 = vmatprep.subr.mxu0 0.0
    %1026 = vmatpush1.msra.mxu0 %v367
    %1027 = vmatprep.subr.mxu0 0.0
    %1028 = vmatpush1.msra.mxu0 %v368
    %1029 = vmatprep.subr.mxu0 0.0
    %1030 = vmatpush1.msra.mxu0 0.0
    %1031 = vmatprep.subr.mxu0 0.0
    %1032 = vmatpush1.msra.mxu0 0.0
    %1033 = vmatprep.subr.mxu0 0.0
    %1034 = vmatpush1.msra.mxu0 0.0
    %1035 = vmatprep.subr.mxu0 0.0
    %1036 = vmatpush1.msra.mxu0 0.0
    %1037 = vmatprep.subr.mxu0 0.0
    %1038 = vmatpush1.msra.mxu0 0.0
    %1039 = vmatprep.subr.mxu0 0.0
    %1040 = vmatpush1.msra.mxu0 0.0
    %1041 = vmatprep.subr.mxu0 0.0
    %1042 = vmatpush1.msra.mxu0 0.0
    %1043 = vmatprep.subr.mxu0 0.0
    %1044 = vmatpush1.msra.mxu0 0.0
    %1045 = vmatprep.subr.mxu0 0.0
    %1046 = vmatpush1.msra.mxu0 0.0
    %1047 = vmatprep.subr.mxu0 0.0
    %1048 = vmatpush1.msra.mxu0 0.0
    %1049 = vmatprep.subr.mxu0 0.0
    %1050 = vmatpush1.msra.mxu0 0.0
    %1051 = vmatprep.subr.mxu0 0.0
    %1052 = vmatpush1.msra.mxu0 0.0
    %1053 = vmatprep.subr.mxu0 0.0
    %1054 = vmatpush1.msra.mxu0 0.0
    %1055 = vmatprep.subr.mxu0 0.0
    %1056 = vmatpush1.msra.mxu0 0.0
    %1057 = vmatprep.subr.mxu0 0.0
    %1058 = vmatpush1.msra.mxu0 0.0
    %1059 = vmatprep.subr.mxu0 0.0
    %1060 = vmatpush1.msra.mxu0 0.0
    %1061 = vmatprep.subr.mxu0 0.0
    %1062 = vmatpush1.msra.mxu0 0.0
    %1063 = vmatprep.subr.mxu0 0.0
    %1064 = vmatpush1.msra.mxu0 0.0
    %1065 = vmatprep.subr.mxu0 0.0
    %1066 = vmatpush1.msra.mxu0 0.0
    %1067 = vmatprep.subr.mxu0 0.0
    %1068 = vmatpush1.msra.mxu0 0.0
    %1069 = vmatprep.subr.mxu0 0.0
    %1070 = vmatpush1.msra.mxu0 0.0
    %1071 = vmatprep.subr.mxu0 0.0
    %1072 = vmatpush1.msra.mxu0 0.0
    %1073 = vmatprep.subr.mxu0 0.0
    %1074 = vmatpush1.msra.mxu0 0.0
    %1075 = vmatprep.subr.mxu0 0.0
    %1076 = vmatpush1.msra.mxu0 0.0
    %1077 = vmatprep.subr.mxu0 0.0
    %1078 = vmatpush1.msra.mxu0 0.0
    %1079 = vmatprep.subr.mxu0 0.0
    %1080 = vmatpush1.msra.mxu0 0.0
    %1081 = vmatprep.subr.mxu0 0.0
    %1082 = vmatpush1.msra.mxu0 0.0
    %1083 = vmatprep.subr.mxu0 0.0
    %1084 = vmatpush1.msra.mxu0 0.0
    %1085 = vmatprep.mubr.f32.mxu0 0.0
    %1086 = vmatmul.mubr.f32.gmra.mrb[0].mxu0 %v1019
    %v1087 = vpop.f32.mrb[0].mxu0
    %v1088 = vadd.f32 0.0, %v1087
    %v1089 = vpop.f32.mrb[0].mxu0
    %1090 = vdwg.mxu0
    %v1091 = vadd.f32 %v1015, %v1088
    %v1092 = vxor.u32 %v1091, 2147483648
    %v1093 = vmul.f32 %v1092, 1.442695
    %v1094 = vpow.pop %v1093
    %v1095 = vadd.f32 %v1094, 1.0
    %v1096 = vrcp.pop %v1095
    %v1097 = vmul.f32 1.0, %v1096
    %v1098 = vtanh.pop %v1091
    %v1099 = vmul.f32 %v1097, %v1014
    %1101 = vrot.lane.b32.xlu0 %v1098, 64
    %v1102 = vpop.permute.xlu0 %1101
    %v1104 = vmul.f32 %v1097, %v1102
    %1106 = vrot.lane.b32.xlu0 %v1104, 32
    %v1107 = vpop.permute.xlu0 %1106
    %v1109 = vadd.f32 %v1099, %v1107
    %v1110 = vtanh.pop %v1109
    %1112 = vrot.lane.b32.xlu0 %v1110, 64
    %v1113 = vpop.permute.xlu0 %1112
    %v1115 = vmul.f32 %v1097, %v1113
    %v1116 = vsel %vm362, 1, 0
    %1117 = vset.pattern.permute.xlu0 0
    %1118 = vperm.xlu0 %1117, %v1116
    %v1119 = vpop.permute.xlu0 %1118
    %vm1120 = vcmp.eq.s32.totalorder %v1119, 1
    %v1121 = vsel %vm1120, %v1115, %v1013
    %v1122 = vsel %vm1120, %v1109, %v1014
    %v1123 = vld [vmem:[#allocation2 + $0x38] sm:$0xff]
    %1125 = vrot.lane.b32.xlu0 %v1121, 32
    %v1126 = vpop.permute.xlu0 %1125
    %v1127 = vsel %vm369, %v1126, 0
    %1129 = vmatprep.subr.mxu0 0.0
    %1130 = vmatpush1.msra.mxu0 %v365
    %1131 = vmatprep.subr.mxu0 0.0
    %1132 = vmatpush1.msra.mxu0 %v366
    %1133 = vmatprep.subr.mxu0 0.0
    %1134 = vmatpush1.msra.mxu0 %v367
    %1135 = vmatprep.subr.mxu0 0.0
    %1136 = vmatpush1.msra.mxu0 %v368
    %1137 = vmatprep.subr.mxu0 0.0
    %1138 = vmatpush1.msra.mxu0 0.0
    %1139 = vmatprep.subr.mxu0 0.0
    %1140 = vmatpush1.msra.mxu0 0.0
    %1141 = vmatprep.subr.mxu0 0.0
    %1142 = vmatpush1.msra.mxu0 0.0
    %1143 = vmatprep.subr.mxu0 0.0
    %1144 = vmatpush1.msra.mxu0 0.0
    %1145 = vmatprep.subr.mxu0 0.0
    %1146 = vmatpush1.msra.mxu0 0.0
    %1147 = vmatprep.subr.mxu0 0.0
    %1148 = vmatpush1.msra.mxu0 0.0
    %1149 = vmatprep.subr.mxu0 0.0
    %1150 = vmatpush1.msra.mxu0 0.0
    %1151 = vmatprep.subr.mxu0 0.0
    %1152 = vmatpush1.msra.mxu0 0.0
    %1153 = vmatprep.subr.mxu0 0.0
    %1154 = vmatpush1.msra.mxu0 0.0
    %1155 = vmatprep.subr.mxu0 0.0
    %1156 = vmatpush1.msra.mxu0 0.0
    %1157 = vmatprep.subr.mxu0 0.0
    %1158 = vmatpush1.msra.mxu0 0.0
    %1159 = vmatprep.subr.mxu0 0.0
    %1160 = vmatpush1.msra.mxu0 0.0
    %1161 = vmatprep.subr.mxu0 0.0
    %1162 = vmatpush1.msra.mxu0 0.0
    %1163 = vmatprep.subr.mxu0 0.0
    %1164 = vmatpush1.msra.mxu0 0.0
    %1165 = vmatprep.subr.mxu0 0.0
    %1166 = vmatpush1.msra.mxu0 0.0
    %1167 = vmatprep.subr.mxu0 0.0
    %1168 = vmatpush1.msra.mxu0 0.0
    %1169 = vmatprep.subr.mxu0 0.0
    %1170 = vmatpush1.msra.mxu0 0.0
    %1171 = vmatprep.subr.mxu0 0.0
    %1172 = vmatpush1.msra.mxu0 0.0
    %1173 = vmatprep.subr.mxu0 0.0
    %1174 = vmatpush1.msra.mxu0 0.0
    %1175 = vmatprep.subr.mxu0 0.0
    %1176 = vmatpush1.msra.mxu0 0.0
    %1177 = vmatprep.subr.mxu0 0.0
    %1178 = vmatpush1.msra.mxu0 0.0
    %1179 = vmatprep.subr.mxu0 0.0
    %1180 = vmatpush1.msra.mxu0 0.0
    %1181 = vmatprep.subr.mxu0 0.0
    %1182 = vmatpush1.msra.mxu0 0.0
    %1183 = vmatprep.subr.mxu0 0.0
    %1184 = vmatpush1.msra.mxu0 0.0
    %1185 = vmatprep.subr.mxu0 0.0
    %1186 = vmatpush1.msra.mxu0 0.0
    %1187 = vmatprep.subr.mxu0 0.0
    %1188 = vmatpush1.msra.mxu0 0.0
    %1189 = vmatprep.subr.mxu0 0.0
    %1190 = vmatpush1.msra.mxu0 0.0
    %1191 = vmatprep.subr.mxu0 0.0
    %1192 = vmatpush1.msra.mxu0 0.0
    %1193 = vmatprep.mubr.f32.mxu0 0.0
    %1194 = vmatmul.mubr.f32.gmra.mrb[0].mxu0 %v1127
    %v1195 = vpop.f32.mrb[0].mxu0
    %v1196 = vadd.f32 0.0, %v1195
    %v1197 = vpop.f32.mrb[0].mxu0
    %1198 = vdwg.mxu0
    %v1199 = vadd.f32 %v1123, %v1196
    %v1200 = vxor.u32 %v1199, 2147483648
    %v1201 = vmul.f32 %v1200, 1.442695
    %v1202 = vpow.pop %v1201
    %v1203 = vadd.f32 %v1202, 1.0
    %v1204 = vrcp.pop %v1203
    %v1205 = vmul.f32 1.0, %v1204
    %v1206 = vtanh.pop %v1199
    %v1207 = vmul.f32 %v1205, %v1122
    %1209 = vrot.lane.b32.xlu0 %v1206, 64
    %v1210 = vpop.permute.xlu0 %1209
    %v1212 = vmul.f32 %v1205, %v1210
    %1214 = vrot.lane.b32.xlu0 %v1212, 32
    %v1215 = vpop.permute.xlu0 %1214
    %v1217 = vadd.f32 %v1207, %v1215
    %v1218 = vtanh.pop %v1217
    %1220 = vrot.lane.b32.xlu0 %v1218, 64
    %v1221 = vpop.permute.xlu0 %1220
    %v1223 = vmul.f32 %v1205, %v1221
    %v1224 = vsel %vm363, 1, 0
    %1225 = vset.pattern.permute.xlu0 0
    %1226 = vperm.xlu0 %1225, %v1224
    %v1227 = vpop.permute.xlu0 %1226
    %vm1228 = vcmp.eq.s32.totalorder %v1227, 1
    %v1229 = vsel %vm1228, %v1223, %v1121
    %v1230 = vld [vmem:[#allocation3] sm:$0xff]
    %v1231 = vld [vmem:[%s7] sm:$0xff]
    %v1232 = vld [vmem:[%s7 + $0x8] sm:$0xff]
    %v1233 = vld [vmem:[%s7 + $0x10] sm:$0xff]
    %v1234 = vld [vmem:[%s7 + $0x18] sm:$0xff]
    %1236 = vrot.lane.b32.xlu0 %v1229, 32
    %v1237 = vpop.permute.xlu0 %1236
    %v1238 = vsel %vm369, %v1237, 0
    %1240 = vmatprep.subr.mxu0 0.0
    %1241 = vmatpush1.msra.mxu0 %v1231
    %1242 = vmatprep.subr.mxu0 0.0
    %1243 = vmatpush1.msra.mxu0 %v1232
    %1244 = vmatprep.subr.mxu0 0.0
    %1245 = vmatpush1.msra.mxu0 %v1233
    %1246 = vmatprep.subr.mxu0 0.0
    %1247 = vmatpush1.msra.mxu0 %v1234
    %1248 = vmatprep.subr.mxu0 0.0
    %1249 = vmatpush1.msra.mxu0 0.0
    %1250 = vmatprep.subr.mxu0 0.0
    %1251 = vmatpush1.msra.mxu0 0.0
    %1252 = vmatprep.subr.mxu0 0.0
    %1253 = vmatpush1.msra.mxu0 0.0
    %1254 = vmatprep.subr.mxu0 0.0
    %1255 = vmatpush1.msra.mxu0 0.0
    %1256 = vmatprep.subr.mxu0 0.0
    %1257 = vmatpush1.msra.mxu0 0.0
    %1258 = vmatprep.subr.mxu0 0.0
    %1259 = vmatpush1.msra.mxu0 0.0
    %1260 = vmatprep.subr.mxu0 0.0
    %1261 = vmatpush1.msra.mxu0 0.0
    %1262 = vmatprep.subr.mxu0 0.0
    %1263 = vmatpush1.msra.mxu0 0.0
    %1264 = vmatprep.subr.mxu0 0.0
    %1265 = vmatpush1.msra.mxu0 0.0
    %1266 = vmatprep.subr.mxu0 0.0
    %1267 = vmatpush1.msra.mxu0 0.0
    %1268 = vmatprep.subr.mxu0 0.0
    %1269 = vmatpush1.msra.mxu0 0.0
    %1270 = vmatprep.subr.mxu0 0.0
    %1271 = vmatpush1.msra.mxu0 0.0
    %1272 = vmatprep.subr.mxu0 0.0
    %1273 = vmatpush1.msra.mxu0 0.0
    %1274 = vmatprep.subr.mxu0 0.0
    %1275 = vmatpush1.msra.mxu0 0.0
    %1276 = vmatprep.subr.mxu0 0.0
    %1277 = vmatpush1.msra.mxu0 0.0
    %1278 = vmatprep.subr.mxu0 0.0
    %1279 = vmatpush1.msra.mxu0 0.0
    %1280 = vmatprep.subr.mxu0 0.0
    %1281 = vmatpush1.msra.mxu0 0.0
    %1282 = vmatprep.subr.mxu0 0.0
    %1283 = vmatpush1.msra.mxu0 0.0
    %1284 = vmatprep.subr.mxu0 0.0
    %1285 = vmatpush1.msra.mxu0 0.0
    %1286 = vmatprep.subr.mxu0 0.0
    %1287 = vmatpush1.msra.mxu0 0.0
    %1288 = vmatprep.subr.mxu0 0.0
    %1289 = vmatpush1.msra.mxu0 0.0
    %1290 = vmatprep.subr.mxu0 0.0
    %1291 = vmatpush1.msra.mxu0 0.0
    %1292 = vmatprep.subr.mxu0 0.0
    %1293 = vmatpush1.msra.mxu0 0.0
    %1294 = vmatprep.subr.mxu0 0.0
    %1295 = vmatpush1.msra.mxu0 0.0
    %1296 = vmatprep.subr.mxu0 0.0
    %1297 = vmatpush1.msra.mxu0 0.0
    %1298 = vmatprep.subr.mxu0 0.0
    %1299 = vmatpush1.msra.mxu0 0.0
    %1300 = vmatprep.subr.mxu0 0.0
    %1301 = vmatpush1.msra.mxu0 0.0
    %1302 = vmatprep.subr.mxu0 0.0
    %1303 = vmatpush1.msra.mxu0 0.0
    %1304 = vmatprep.mubr.f32.mxu0 0.0
    %1305 = vmatmul.mubr.f32.gmra.mrb[0].mxu0 %v1238
    %v1306 = vpop.f32.mrb[0].mxu0
    %v1307 = vadd.f32 0.0, %v1306
    %v1308 = vpop.f32.mrb[0].mxu0
    %1309 = vdwg.mxu0
    %v1310 = vadd.f32 %v1230, %v1307
    %v1311 = vxor.u32 %v1310, 2147483648
    %v1312 = vmul.f32 %v1311, 1.442695
    %v1313 = vpow.pop %v1312
    %v1314 = vadd.f32 %v1313, 1.0
    %v1315 = vrcp.pop %v1314
    %v1316 = vmul.f32 1.0, %v1315
    %v1317 = vtanh.pop %v1310
    %v1318 = vmul.f32 %v1316, 0.0
    %1320 = vrot.lane.b32.xlu0 %v1317, 64
    %v1321 = vpop.permute.xlu0 %1320
    %v1323 = vmul.f32 %v1316, %v1321
    %1325 = vrot.lane.b32.xlu0 %v1323, 32
    %v1326 = vpop.permute.xlu0 %1325
    %v1328 = vadd.f32 %v1318, %v1326
    %v1329 = vtanh.pop %v1328
    %1331 = vrot.lane.b32.xlu0 %v1329, 64
    %v1332 = vpop.permute.xlu0 %1331
    %v1334 = vmul.f32 %v1316, %v1332
    %1336 = vrot.lane.b32.xlu0 %v1334, 32
    %v1337 = vpop.permute.xlu0 %1336
    %1339 = vst.msk [vmem:[#allocation4] sm:$0xff] %vm369, %v1337
    %v1340 = vld [vmem:[#allocation3 + $0x8] sm:$0xff]
    %v1341 = vld [vmem:[%s7] sm:$0xff]
    %v1342 = vld [vmem:[%s7 + $0x8] sm:$0xff]
    %v1343 = vld [vmem:[%s7 + $0x10] sm:$0xff]
    %v1344 = vld [vmem:[%s7 + $0x18] sm:$0xff]
    %v1345 = vsel %vm369, %v1337, 0
    %1347 = vmatprep.subr.mxu0 0.0
    %1348 = vmatpush1.msra.mxu0 %v1341
    %1349 = vmatprep.subr.mxu0 0.0
    %1350 = vmatpush1.msra.mxu0 %v1342
    %1351 = vmatprep.subr.mxu0 0.0
    %1352 = vmatpush1.msra.mxu0 %v1343
    %1353 = vmatprep.subr.mxu0 0.0
    %1354 = vmatpush1.msra.mxu0 %v1344
    %1355 = vmatprep.subr.mxu0 0.0
    %1356 = vmatpush1.msra.mxu0 0.0
    %1357 = vmatprep.subr.mxu0 0.0
    %1358 = vmatpush1.msra.mxu0 0.0
    %1359 = vmatprep.subr.mxu0 0.0
    %1360 = vmatpush1.msra.mxu0 0.0
    %1361 = vmatprep.subr.mxu0 0.0
    %1362 = vmatpush1.msra.mxu0 0.0
    %1363 = vmatprep.subr.mxu0 0.0
    %1364 = vmatpush1.msra.mxu0 0.0
    %1365 = vmatprep.subr.mxu0 0.0
    %1366 = vmatpush1.msra.mxu0 0.0
    %1367 = vmatprep.subr.mxu0 0.0
    %1368 = vmatpush1.msra.mxu0 0.0
    %1369 = vmatprep.subr.mxu0 0.0
    %1370 = vmatpush1.msra.mxu0 0.0
    %1371 = vmatprep.subr.mxu0 0.0
    %1372 = vmatpush1.msra.mxu0 0.0
    %1373 = vmatprep.subr.mxu0 0.0
    %1374 = vmatpush1.msra.mxu0 0.0
    %1375 = vmatprep.subr.mxu0 0.0
    %1376 = vmatpush1.msra.mxu0 0.0
    %1377 = vmatprep.subr.mxu0 0.0
    %1378 = vmatpush1.msra.mxu0 0.0
    %1379 = vmatprep.subr.mxu0 0.0
    %1380 = vmatpush1.msra.mxu0 0.0
    %1381 = vmatprep.subr.mxu0 0.0
    %1382 = vmatpush1.msra.mxu0 0.0
    %1383 = vmatprep.subr.mxu0 0.0
    %1384 = vmatpush1.msra.mxu0 0.0
    %1385 = vmatprep.subr.mxu0 0.0
    %1386 = vmatpush1.msra.mxu0 0.0
    %1387 = vmatprep.subr.mxu0 0.0
    %1388 = vmatpush1.msra.mxu0 0.0
    %1389 = vmatprep.subr.mxu0 0.0
    %1390 = vmatpush1.msra.mxu0 0.0
    %1391 = vmatprep.subr.mxu0 0.0
    %1392 = vmatpush1.msra.mxu0 0.0
    %1393 = vmatprep.subr.mxu0 0.0
    %1394 = vmatpush1.msra.mxu0 0.0
    %1395 = vmatprep.subr.mxu0 0.0
    %1396 = vmatpush1.msra.mxu0 0.0
    %1397 = vmatprep.subr.mxu0 0.0
    %1398 = vmatpush1.msra.mxu0 0.0
    %1399 = vmatprep.subr.mxu0 0.0
    %1400 = vmatpush1.msra.mxu0 0.0
    %1401 = vmatprep.subr.mxu0 0.0
    %1402 = vmatpush1.msra.mxu0 0.0
    %1403 = vmatprep.subr.mxu0 0.0
    %1404 = vmatpush1.msra.mxu0 0.0
    %1405 = vmatprep.subr.mxu0 0.0
    %1406 = vmatpush1.msra.mxu0 0.0
    %1407 = vmatprep.subr.mxu0 0.0
    %1408 = vmatpush1.msra.mxu0 0.0
    %1409 = vmatprep.subr.mxu0 0.0
    %1410 = vmatpush1.msra.mxu0 0.0
    %1411 = vmatprep.mubr.f32.mxu0 0.0
    %1412 = vmatmul.mubr.f32.gmra.mrb[0].mxu0 %v1345
    %v1413 = vpop.f32.mrb[0].mxu0
    %v1414 = vadd.f32 0.0, %v1413
    %v1415 = vpop.f32.mrb[0].mxu0
    %1416 = vdwg.mxu0
    %v1417 = vadd.f32 %v1340, %v1414
    %v1418 = vxor.u32 %v1417, 2147483648
    %v1419 = vmul.f32 %v1418, 1.442695
    %v1420 = vpow.pop %v1419
    %v1421 = vadd.f32 %v1420, 1.0
    %v1422 = vrcp.pop %v1421
    %v1423 = vmul.f32 1.0, %v1422
    %v1424 = vtanh.pop %v1417
    %v1425 = vmul.f32 %v1423, %v1328
    %1427 = vrot.lane.b32.xlu0 %v1424, 64
    %v1428 = vpop.permute.xlu0 %1427
    %v1430 = vmul.f32 %v1423, %v1428
    %1432 = vrot.lane.b32.xlu0 %v1430, 32
    %v1433 = vpop.permute.xlu0 %1432
    %v1435 = vadd.f32 %v1425, %v1433
    %v1436 = vtanh.pop %v1435
    %1438 = vrot.lane.b32.xlu0 %v1436, 64
    %v1439 = vpop.permute.xlu0 %1438
    %v1441 = vmul.f32 %v1423, %v1439
    %1443 = vrot.lane.b32.xlu0 %v1441, 32
    %v1444 = vpop.permute.xlu0 %1443
    %1446 = vst.msk [vmem:[#allocation4 + $0x8] sm:$0xff] %vm369, %v1444
    %v1447 = vld [vmem:[#allocation3 + $0x10] sm:$0xff]
    %v1448 = vld [vmem:[%s7] sm:$0xff]
    %v1449 = vld [vmem:[%s7 + $0x8] sm:$0xff]
    %v1450 = vld [vmem:[%s7 + $0x10] sm:$0xff]
    %v1451 = vld [vmem:[%s7 + $0x18] sm:$0xff]
    %v1452 = vsel %vm369, %v1444, 0
    %1454 = vmatprep.subr.mxu0 0.0
    %1455 = vmatpush1.msra.mxu0 %v1448
    %1456 = vmatprep.subr.mxu0 0.0
    %1457 = vmatpush1.msra.mxu0 %v1449
    %1458 = vmatprep.subr.mxu0 0.0
    %1459 = vmatpush1.msra.mxu0 %v1450
    %1460 = vmatprep.subr.mxu0 0.0
    %1461 = vmatpush1.msra.mxu0 %v1451
    %1462 = vmatprep.subr.mxu0 0.0
    %1463 = vmatpush1.msra.mxu0 0.0
    %1464 = vmatprep.subr.mxu0 0.0
    %1465 = vmatpush1.msra.mxu0 0.0
    %1466 = vmatprep.subr.mxu0 0.0
    %1467 = vmatpush1.msra.mxu0 0.0
    %1468 = vmatprep.subr.mxu0 0.0
    %1469 = vmatpush1.msra.mxu0 0.0
    %1470 = vmatprep.subr.mxu0 0.0
    %1471 = vmatpush1.msra.mxu0 0.0
    %1472 = vmatprep.subr.mxu0 0.0
    %1473 = vmatpush1.msra.mxu0 0.0
    %1474 = vmatprep.subr.mxu0 0.0
    %1475 = vmatpush1.msra.mxu0 0.0
    %1476 = vmatprep.subr.mxu0 0.0
    %1477 = vmatpush1.msra.mxu0 0.0
    %1478 = vmatprep.subr.mxu0 0.0
    %1479 = vmatpush1.msra.mxu0 0.0
    %1480 = vmatprep.subr.mxu0 0.0
    %1481 = vmatpush1.msra.mxu0 0.0
    %1482 = vmatprep.subr.mxu0 0.0
    %1483 = vmatpush1.msra.mxu0 0.0
    %1484 = vmatprep.subr.mxu0 0.0
    %1485 = vmatpush1.msra.mxu0 0.0
    %1486 = vmatprep.subr.mxu0 0.0
    %1487 = vmatpush1.msra.mxu0 0.0
    %1488 = vmatprep.subr.mxu0 0.0
    %1489 = vmatpush1.msra.mxu0 0.0
    %1490 = vmatprep.subr.mxu0 0.0
    %1491 = vmatpush1.msra.mxu0 0.0
    %1492 = vmatprep.subr.mxu0 0.0
    %1493 = vmatpush1.msra.mxu0 0.0
    %1494 = vmatprep.subr.mxu0 0.0
    %1495 = vmatpush1.msra.mxu0 0.0
    %1496 = vmatprep.subr.mxu0 0.0
    %1497 = vmatpush1.msra.mxu0 0.0
    %1498 = vmatprep.subr.mxu0 0.0
    %1499 = vmatpush1.msra.mxu0 0.0
    %1500 = vmatprep.subr.mxu0 0.0
    %1501 = vmatpush1.msra.mxu0 0.0
    %1502 = vmatprep.subr.mxu0 0.0
    %1503 = vmatpush1.msra.mxu0 0.0
    %1504 = vmatprep.subr.mxu0 0.0
    %1505 = vmatpush1.msra.mxu0 0.0
    %1506 = vmatprep.subr.mxu0 0.0
    %1507 = vmatpush1.msra.mxu0 0.0
    %1508 = vmatprep.subr.mxu0 0.0
    %1509 = vmatpush1.msra.mxu0 0.0
    %1510 = vmatprep.subr.mxu0 0.0
    %1511 = vmatpush1.msra.mxu0 0.0
    %1512 = vmatprep.subr.mxu0 0.0
    %1513 = vmatpush1.msra.mxu0 0.0
    %1514 = vmatprep.subr.mxu0 0.0
    %1515 = vmatpush1.msra.mxu0 0.0
    %1516 = vmatprep.subr.mxu0 0.0
    %1517 = vmatpush1.msra.mxu0 0.0
    %1518 = vmatprep.mubr.f32.mxu0 0.0
    %1519 = vmatmul.mubr.f32.gmra.mrb[0].mxu0 %v1452
    %v1520 = vpop.f32.mrb[0].mxu0
    %v1521 = vadd.f32 0.0, %v1520
    %v1522 = vpop.f32.mrb[0].mxu0
    %1523 = vdwg.mxu0
    %v1524 = vadd.f32 %v1447, %v1521
    %v1525 = vxor.u32 %v1524, 2147483648
    %v1526 = vmul.f32 %v1525, 1.442695
    %v1527 = vpow.pop %v1526
    %v1528 = vadd.f32 %v1527, 1.0
    %v1529 = vrcp.pop %v1528
    %v1530 = vmul.f32 1.0, %v1529
    %v1531 = vtanh.pop %v1524
    %v1532 = vmul.f32 %v1530, %v1435
    %1534 = vrot.lane.b32.xlu0 %v1531, 64
    %v1535 = vpop.permute.xlu0 %1534
    %v1537 = vmul.f32 %v1530, %v1535
    %1539 = vrot.lane.b32.xlu0 %v1537, 32
    %v1540 = vpop.permute.xlu0 %1539
    %v1542 = vadd.f32 %v1532, %v1540
    %v1543 = vtanh.pop %v1542
    %1545 = vrot.lane.b32.xlu0 %v1543, 64
    %v1546 = vpop.permute.xlu0 %1545
    %v1548 = vmul.f32 %v1530, %v1546
    %1550 = vrot.lane.b32.xlu0 %v1548, 32
    %v1551 = vpop.permute.xlu0 %1550
    %1553 = vst.msk [vmem:[#allocation4 + $0x10] sm:$0xff] %vm369, %v1551
    %v1554 = vld [vmem:[#allocation3 + $0x18] sm:$0xff]
    %v1555 = vld [vmem:[%s7] sm:$0xff]
    %v1556 = vld [vmem:[%s7 + $0x8] sm:$0xff]
    %v1557 = vld [vmem:[%s7 + $0x10] sm:$0xff]
    %v1558 = vld [vmem:[%s7 + $0x18] sm:$0xff]
    %v1559 = vsel %vm369, %v1551, 0
    %1561 = vmatprep.subr.mxu0 0.0
    %1562 = vmatpush1.msra.mxu0 %v1555
    %1563 = vmatprep.subr.mxu0 0.0
    %1564 = vmatpush1.msra.mxu0 %v1556
    %1565 = vmatprep.subr.mxu0 0.0
    %1566 = vmatpush1.msra.mxu0 %v1557
    %1567 = vmatprep.subr.mxu0 0.0
    %1568 = vmatpush1.msra.mxu0 %v1558
    %1569 = vmatprep.subr.mxu0 0.0
    %1570 = vmatpush1.msra.mxu0 0.0
    %1571 = vmatprep.subr.mxu0 0.0
    %1572 = vmatpush1.msra.mxu0 0.0
    %1573 = vmatprep.subr.mxu0 0.0
    %1574 = vmatpush1.msra.mxu0 0.0
    %1575 = vmatprep.subr.mxu0 0.0
    %1576 = vmatpush1.msra.mxu0 0.0
    %1577 = vmatprep.subr.mxu0 0.0
    %1578 = vmatpush1.msra.mxu0 0.0
    %1579 = vmatprep.subr.mxu0 0.0
    %1580 = vmatpush1.msra.mxu0 0.0
    %1581 = vmatprep.subr.mxu0 0.0
    %1582 = vmatpush1.msra.mxu0 0.0
    %1583 = vmatprep.subr.mxu0 0.0
    %1584 = vmatpush1.msra.mxu0 0.0
    %1585 = vmatprep.subr.mxu0 0.0
    %1586 = vmatpush1.msra.mxu0 0.0
    %1587 = vmatprep.subr.mxu0 0.0
    %1588 = vmatpush1.msra.mxu0 0.0
    %1589 = vmatprep.subr.mxu0 0.0
    %1590 = vmatpush1.msra.mxu0 0.0
    %1591 = vmatprep.subr.mxu0 0.0
    %1592 = vmatpush1.msra.mxu0 0.0
    %1593 = vmatprep.subr.mxu0 0.0
    %1594 = vmatpush1.msra.mxu0 0.0
    %1595 = vmatprep.subr.mxu0 0.0
    %1596 = vmatpush1.msra.mxu0 0.0
    %1597 = vmatprep.subr.mxu0 0.0
    %1598 = vmatpush1.msra.mxu0 0.0
    %1599 = vmatprep.subr.mxu0 0.0
    %1600 = vmatpush1.msra.mxu0 0.0
    %1601 = vmatprep.subr.mxu0 0.0
    %1602 = vmatpush1.msra.mxu0 0.0
    %1603 = vmatprep.subr.mxu0 0.0
    %1604 = vmatpush1.msra.mxu0 0.0
    %1605 = vmatprep.subr.mxu0 0.0
    %1606 = vmatpush1.msra.mxu0 0.0
    %1607 = vmatprep.subr.mxu0 0.0
    %1608 = vmatpush1.msra.mxu0 0.0
    %1609 = vmatprep.subr.mxu0 0.0
    %1610 = vmatpush1.msra.mxu0 0.0
    %1611 = vmatprep.subr.mxu0 0.0
    %1612 = vmatpush1.msra.mxu0 0.0
    %1613 = vmatprep.subr.mxu0 0.0
    %1614 = vmatpush1.msra.mxu0 0.0
    %1615 = vmatprep.subr.mxu0 0.0
    %1616 = vmatpush1.msra.mxu0 0.0
    %1617 = vmatprep.subr.mxu0 0.0
    %1618 = vmatpush1.msra.mxu0 0.0
    %1619 = vmatprep.subr.mxu0 0.0
    %1620 = vmatpush1.msra.mxu0 0.0
    %1621 = vmatprep.subr.mxu0 0.0
    %1622 = vmatpush1.msra.mxu0 0.0
    %1623 = vmatprep.subr.mxu0 0.0
    %1624 = vmatpush1.msra.mxu0 0.0
    %1625 = vmatprep.mubr.f32.mxu0 0.0
    %1626 = vmatmul.mubr.f32.gmra.mrb[0].mxu0 %v1559
    %v1627 = vpop.f32.mrb[0].mxu0
    %v1628 = vadd.f32 0.0, %v1627
    %v1629 = vpop.f32.mrb[0].mxu0
    %1630 = vdwg.mxu0
    %v1631 = vadd.f32 %v1554, %v1628
    %v1632 = vxor.u32 %v1631, 2147483648
    %v1633 = vmul.f32 %v1632, 1.442695
    %v1634 = vpow.pop %v1633
    %v1635 = vadd.f32 %v1634, 1.0
    %v1636 = vrcp.pop %v1635
    %v1637 = vmul.f32 1.0, %v1636
    %v1638 = vtanh.pop %v1631
    %v1639 = vmul.f32 %v1637, %v1542
    %1641 = vrot.lane.b32.xlu0 %v1638, 64
    %v1642 = vpop.permute.xlu0 %1641
    %v1644 = vmul.f32 %v1637, %v1642
    %1646 = vrot.lane.b32.xlu0 %v1644, 32
    %v1647 = vpop.permute.xlu0 %1646
    %v1649 = vadd.f32 %v1639, %v1647
    %v1650 = vtanh.pop %v1649
    %1652 = vrot.lane.b32.xlu0 %v1650, 64
    %v1653 = vpop.permute.xlu0 %1652
    %v1655 = vmul.f32 %v1637, %v1653
    %1657 = vrot.lane.b32.xlu0 %v1655, 32
    %v1658 = vpop.permute.xlu0 %1657
    %1660 = vst.msk [vmem:[#allocation4 + $0x18] sm:$0xff] %vm369, %v1658
    %v1661 = vld [vmem:[#allocation3 + $0x20] sm:$0xff]
    %v1662 = vld [vmem:[%s7] sm:$0xff]
    %v1663 = vld [vmem:[%s7 + $0x8] sm:$0xff]
    %v1664 = vld [vmem:[%s7 + $0x10] sm:$0xff]
    %v1665 = vld [vmem:[%s7 + $0x18] sm:$0xff]
    %v1666 = vsel %vm369, %v1658, 0
    %1668 = vmatprep.subr.mxu0 0.0
    %1669 = vmatpush1.msra.mxu0 %v1662
    %1670 = vmatprep.subr.mxu0 0.0
    %1671 = vmatpush1.msra.mxu0 %v1663
    %1672 = vmatprep.subr.mxu0 0.0
    %1673 = vmatpush1.msra.mxu0 %v1664
    %1674 = vmatprep.subr.mxu0 0.0
    %1675 = vmatpush1.msra.mxu0 %v1665
    %1676 = vmatprep.subr.mxu0 0.0
    %1677 = vmatpush1.msra.mxu0 0.0
    %1678 = vmatprep.subr.mxu0 0.0
    %1679 = vmatpush1.msra.mxu0 0.0
    %1680 = vmatprep.subr.mxu0 0.0
    %1681 = vmatpush1.msra.mxu0 0.0
    %1682 = vmatprep.subr.mxu0 0.0
    %1683 = vmatpush1.msra.mxu0 0.0
    %1684 = vmatprep.subr.mxu0 0.0
    %1685 = vmatpush1.msra.mxu0 0.0
    %1686 = vmatprep.subr.mxu0 0.0
    %1687 = vmatpush1.msra.mxu0 0.0
    %1688 = vmatprep.subr.mxu0 0.0
    %1689 = vmatpush1.msra.mxu0 0.0
    %1690 = vmatprep.subr.mxu0 0.0
    %1691 = vmatpush1.msra.mxu0 0.0
    %1692 = vmatprep.subr.mxu0 0.0
    %1693 = vmatpush1.msra.mxu0 0.0
    %1694 = vmatprep.subr.mxu0 0.0
    %1695 = vmatpush1.msra.mxu0 0.0
    %1696 = vmatprep.subr.mxu0 0.0
    %1697 = vmatpush1.msra.mxu0 0.0
    %1698 = vmatprep.subr.mxu0 0.0
    %1699 = vmatpush1.msra.mxu0 0.0
    %1700 = vmatprep.subr.mxu0 0.0
    %1701 = vmatpush1.msra.mxu0 0.0
    %1702 = vmatprep.subr.mxu0 0.0
    %1703 = vmatpush1.msra.mxu0 0.0
    %1704 = vmatprep.subr.mxu0 0.0
    %1705 = vmatpush1.msra.mxu0 0.0
    %1706 = vmatprep.subr.mxu0 0.0
    %1707 = vmatpush1.msra.mxu0 0.0
    %1708 = vmatprep.subr.mxu0 0.0
    %1709 = vmatpush1.msra.mxu0 0.0
    %1710 = vmatprep.subr.mxu0 0.0
    %1711 = vmatpush1.msra.mxu0 0.0
    %1712 = vmatprep.subr.mxu0 0.0
    %1713 = vmatpush1.msra.mxu0 0.0
    %1714 = vmatprep.subr.mxu0 0.0
    %1715 = vmatpush1.msra.mxu0 0.0
    %1716 = vmatprep.subr.mxu0 0.0
    %1717 = vmatpush1.msra.mxu0 0.0
    %1718 = vmatprep.subr.mxu0 0.0
    %1719 = vmatpush1.msra.mxu0 0.0
    %1720 = vmatprep.subr.mxu0 0.0
    %1721 = vmatpush1.msra.mxu0 0.0
    %1722 = vmatprep.subr.mxu0 0.0
    %1723 = vmatpush1.msra.mxu0 0.0
    %1724 = vmatprep.subr.mxu0 0.0
    %1725 = vmatpush1.msra.mxu0 0.0
    %1726 = vmatprep.subr.mxu0 0.0
    %1727 = vmatpush1.msra.mxu0 0.0
    %1728 = vmatprep.subr.mxu0 0.0
    %1729 = vmatpush1.msra.mxu0 0.0
    %1730 = vmatprep.subr.mxu0 0.0
    %1731 = vmatpush1.msra.mxu0 0.0
    %1732 = vmatprep.mubr.f32.mxu0 0.0
    %1733 = vmatmul.mubr.f32.gmra.mrb[0].mxu0 %v1666
    %v1734 = vpop.f32.mrb[0].mxu0
    %v1735 = vadd.f32 0.0, %v1734
    %v1736 = vpop.f32.mrb[0].mxu0
    %1737 = vdwg.mxu0
    %v1738 = vadd.f32 %v1661, %v1735
    %v1739 = vxor.u32 %v1738, 2147483648
    %v1740 = vmul.f32 %v1739, 1.442695
    %v1741 = vpow.pop %v1740
    %v1742 = vadd.f32 %v1741, 1.0
    %v1743 = vrcp.pop %v1742
    %v1744 = vmul.f32 1.0, %v1743
    %v1745 = vtanh.pop %v1738
    %v1746 = vmul.f32 %v1744, %v1649
    %1748 = vrot.lane.b32.xlu0 %v1745, 64
    %v1749 = vpop.permute.xlu0 %1748
    %v1751 = vmul.f32 %v1744, %v1749
    %1753 = vrot.lane.b32.xlu0 %v1751, 32
    %v1754 = vpop.permute.xlu0 %1753
    %v1756 = vadd.f32 %v1746, %v1754
    %v1757 = vtanh.pop %v1756
    %1759 = vrot.lane.b32.xlu0 %v1757, 64
    %v1760 = vpop.permute.xlu0 %1759
    %v1762 = vmul.f32 %v1744, %v1760
    %1764 = vrot.lane.b32.xlu0 %v1762, 32
    %v1765 = vpop.permute.xlu0 %1764
    %1767 = vst.msk [vmem:[#allocation4 + $0x20] sm:$0xff] %vm369, %v1765
    %v1768 = vld [vmem:[#allocation3 + $0x28] sm:$0xff]
    %v1769 = vld [vmem:[%s7] sm:$0xff]
    %v1770 = vld [vmem:[%s7 + $0x8] sm:$0xff]
    %v1771 = vld [vmem:[%s7 + $0x10] sm:$0xff]
    %v1772 = vld [vmem:[%s7 + $0x18] sm:$0xff]
    %v1773 = vsel %vm369, %v1765, 0
    %1775 = vmatprep.subr.mxu0 0.0
    %1776 = vmatpush1.msra.mxu0 %v1769
    %1777 = vmatprep.subr.mxu0 0.0
    %1778 = vmatpush1.msra.mxu0 %v1770
    %1779 = vmatprep.subr.mxu0 0.0
    %1780 = vmatpush1.msra.mxu0 %v1771
    %1781 = vmatprep.subr.mxu0 0.0
    %1782 = vmatpush1.msra.mxu0 %v1772
    %1783 = vmatprep.subr.mxu0 0.0
    %1784 = vmatpush1.msra.mxu0 0.0
    %1785 = vmatprep.subr.mxu0 0.0
    %1786 = vmatpush1.msra.mxu0 0.0
    %1787 = vmatprep.subr.mxu0 0.0
    %1788 = vmatpush1.msra.mxu0 0.0
    %1789 = vmatprep.subr.mxu0 0.0
    %1790 = vmatpush1.msra.mxu0 0.0
    %1791 = vmatprep.subr.mxu0 0.0
    %1792 = vmatpush1.msra.mxu0 0.0
    %1793 = vmatprep.subr.mxu0 0.0
    %1794 = vmatpush1.msra.mxu0 0.0
    %1795 = vmatprep.subr.mxu0 0.0
    %1796 = vmatpush1.msra.mxu0 0.0
    %1797 = vmatprep.subr.mxu0 0.0
    %1798 = vmatpush1.msra.mxu0 0.0
    %1799 = vmatprep.subr.mxu0 0.0
    %1800 = vmatpush1.msra.mxu0 0.0
    %1801 = vmatprep.subr.mxu0 0.0
    %1802 = vmatpush1.msra.mxu0 0.0
    %1803 = vmatprep.subr.mxu0 0.0
    %1804 = vmatpush1.msra.mxu0 0.0
    %1805 = vmatprep.subr.mxu0 0.0
    %1806 = vmatpush1.msra.mxu0 0.0
    %1807 = vmatprep.subr.mxu0 0.0
    %1808 = vmatpush1.msra.mxu0 0.0
    %1809 = vmatprep.subr.mxu0 0.0
    %1810 = vmatpush1.msra.mxu0 0.0
    %1811 = vmatprep.subr.mxu0 0.0
    %1812 = vmatpush1.msra.mxu0 0.0
    %1813 = vmatprep.subr.mxu0 0.0
    %1814 = vmatpush1.msra.mxu0 0.0
    %1815 = vmatprep.subr.mxu0 0.0
    %1816 = vmatpush1.msra.mxu0 0.0
    %1817 = vmatprep.subr.mxu0 0.0
    %1818 = vmatpush1.msra.mxu0 0.0
    %1819 = vmatprep.subr.mxu0 0.0
    %1820 = vmatpush1.msra.mxu0 0.0
    %1821 = vmatprep.subr.mxu0 0.0
    %1822 = vmatpush1.msra.mxu0 0.0
    %1823 = vmatprep.subr.mxu0 0.0
    %1824 = vmatpush1.msra.mxu0 0.0
    %1825 = vmatprep.subr.mxu0 0.0
    %1826 = vmatpush1.msra.mxu0 0.0
    %1827 = vmatprep.subr.mxu0 0.0
    %1828 = vmatpush1.msra.mxu0 0.0
    %1829 = vmatprep.subr.mxu0 0.0
    %1830 = vmatpush1.msra.mxu0 0.0
    %1831 = vmatprep.subr.mxu0 0.0
    %1832 = vmatpush1.msra.mxu0 0.0
    %1833 = vmatprep.subr.mxu0 0.0
    %1834 = vmatpush1.msra.mxu0 0.0
    %1835 = vmatprep.subr.mxu0 0.0
    %1836 = vmatpush1.msra.mxu0 0.0
    %1837 = vmatprep.subr.mxu0 0.0
    %1838 = vmatpush1.msra.mxu0 0.0
    %1839 = vmatprep.mubr.f32.mxu0 0.0
    %1840 = vmatmul.mubr.f32.gmra.mrb[0].mxu0 %v1773
    %v1841 = vpop.f32.mrb[0].mxu0
    %v1842 = vadd.f32 0.0, %v1841
    %v1843 = vpop.f32.mrb[0].mxu0
    %1844 = vdwg.mxu0
    %v1845 = vadd.f32 %v1768, %v1842
    %v1846 = vxor.u32 %v1845, 2147483648
    %v1847 = vmul.f32 %v1846, 1.442695
    %v1848 = vpow.pop %v1847
    %v1849 = vadd.f32 %v1848, 1.0
    %v1850 = vrcp.pop %v1849
    %v1851 = vmul.f32 1.0, %v1850
    %v1852 = vtanh.pop %v1845
    %v1853 = vmul.f32 %v1851, %v1756
    %1855 = vrot.lane.b32.xlu0 %v1852, 64
    %v1856 = vpop.permute.xlu0 %1855
    %v1858 = vmul.f32 %v1851, %v1856
    %1860 = vrot.lane.b32.xlu0 %v1858, 32
    %v1861 = vpop.permute.xlu0 %1860
    %v1863 = vadd.f32 %v1853, %v1861
    %v1864 = vtanh.pop %v1863
    %1866 = vrot.lane.b32.xlu0 %v1864, 64
    %v1867 = vpop.permute.xlu0 %1866
    %v1869 = vmul.f32 %v1851, %v1867
    %1871 = vrot.lane.b32.xlu0 %v1869, 32
    %v1872 = vpop.permute.xlu0 %1871
    %1874 = vst.msk [vmem:[#allocation4 + $0x28] sm:$0xff] %vm369, %v1872
    %v1875 = vld [vmem:[#allocation3 + $0x30] sm:$0xff]
    %v1876 = vld [vmem:[%s7] sm:$0xff]
    %v1877 = vld [vmem:[%s7 + $0x8] sm:$0xff]
    %v1878 = vld [vmem:[%s7 + $0x10] sm:$0xff]
    %v1879 = vld [vmem:[%s7 + $0x18] sm:$0xff]
    %v1880 = vsel %vm369, %v1872, 0
    %1882 = vmatprep.subr.mxu0 0.0
    %1883 = vmatpush1.msra.mxu0 %v1876
    %1884 = vmatprep.subr.mxu0 0.0
    %1885 = vmatpush1.msra.mxu0 %v1877
    %1886 = vmatprep.subr.mxu0 0.0
    %1887 = vmatpush1.msra.mxu0 %v1878
    %1888 = vmatprep.subr.mxu0 0.0
    %1889 = vmatpush1.msra.mxu0 %v1879
    %1890 = vmatprep.subr.mxu0 0.0
    %1891 = vmatpush1.msra.mxu0 0.0
    %1892 = vmatprep.subr.mxu0 0.0
    %1893 = vmatpush1.msra.mxu0 0.0
    %1894 = vmatprep.subr.mxu0 0.0
    %1895 = vmatpush1.msra.mxu0 0.0
    %1896 = vmatprep.subr.mxu0 0.0
    %1897 = vmatpush1.msra.mxu0 0.0
    %1898 = vmatprep.subr.mxu0 0.0
    %1899 = vmatpush1.msra.mxu0 0.0
    %1900 = vmatprep.subr.mxu0 0.0
    %1901 = vmatpush1.msra.mxu0 0.0
    %1902 = vmatprep.subr.mxu0 0.0
    %1903 = vmatpush1.msra.mxu0 0.0
    %1904 = vmatprep.subr.mxu0 0.0
    %1905 = vmatpush1.msra.mxu0 0.0
    %1906 = vmatprep.subr.mxu0 0.0
    %1907 = vmatpush1.msra.mxu0 0.0
    %1908 = vmatprep.subr.mxu0 0.0
    %1909 = vmatpush1.msra.mxu0 0.0
    %1910 = vmatprep.subr.mxu0 0.0
    %1911 = vmatpush1.msra.mxu0 0.0
    %1912 = vmatprep.subr.mxu0 0.0
    %1913 = vmatpush1.msra.mxu0 0.0
    %1914 = vmatprep.subr.mxu0 0.0
    %1915 = vmatpush1.msra.mxu0 0.0
    %1916 = vmatprep.subr.mxu0 0.0
    %1917 = vmatpush1.msra.mxu0 0.0
    %1918 = vmatprep.subr.mxu0 0.0
    %1919 = vmatpush1.msra.mxu0 0.0
    %1920 = vmatprep.subr.mxu0 0.0
    %1921 = vmatpush1.msra.mxu0 0.0
    %1922 = vmatprep.subr.mxu0 0.0
    %1923 = vmatpush1.msra.mxu0 0.0
    %1924 = vmatprep.subr.mxu0 0.0
    %1925 = vmatpush1.msra.mxu0 0.0
    %1926 = vmatprep.subr.mxu0 0.0
    %1927 = vmatpush1.msra.mxu0 0.0
    %1928 = vmatprep.subr.mxu0 0.0
    %1929 = vmatpush1.msra.mxu0 0.0
    %1930 = vmatprep.subr.mxu0 0.0
    %1931 = vmatpush1.msra.mxu0 0.0
    %1932 = vmatprep.subr.mxu0 0.0
    %1933 = vmatpush1.msra.mxu0 0.0
    %1934 = vmatprep.subr.mxu0 0.0
    %1935 = vmatpush1.msra.mxu0 0.0
    %1936 = vmatprep.subr.mxu0 0.0
    %1937 = vmatpush1.msra.mxu0 0.0
    %1938 = vmatprep.subr.mxu0 0.0
    %1939 = vmatpush1.msra.mxu0 0.0
    %1940 = vmatprep.subr.mxu0 0.0
    %1941 = vmatpush1.msra.mxu0 0.0
    %1942 = vmatprep.subr.mxu0 0.0
    %1943 = vmatpush1.msra.mxu0 0.0
    %1944 = vmatprep.subr.mxu0 0.0
    %1945 = vmatpush1.msra.mxu0 0.0
    %1946 = vmatprep.mubr.f32.mxu0 0.0
    %1947 = vmatmul.mubr.f32.gmra.mrb[0].mxu0 %v1880
    %v1948 = vpop.f32.mrb[0].mxu0
    %v1949 = vadd.f32 0.0, %v1948
    %v1950 = vpop.f32.mrb[0].mxu0
    %1951 = vdwg.mxu0
    %v1952 = vadd.f32 %v1875, %v1949
    %v1953 = vxor.u32 %v1952, 2147483648
    %v1954 = vmul.f32 %v1953, 1.442695
    %v1955 = vpow.pop %v1954
    %v1956 = vadd.f32 %v1955, 1.0
    %v1957 = vrcp.pop %v1956
    %v1958 = vmul.f32 1.0, %v1957
    %v1959 = vtanh.pop %v1952
    %v1960 = vmul.f32 %v1958, %v1863
    %1962 = vrot.lane.b32.xlu0 %v1959, 64
    %v1963 = vpop.permute.xlu0 %1962
    %v1965 = vmul.f32 %v1958, %v1963
    %1967 = vrot.lane.b32.xlu0 %v1965, 32
    %v1968 = vpop.permute.xlu0 %1967
    %v1970 = vadd.f32 %v1960, %v1968
    %v1971 = vtanh.pop %v1970
    %1973 = vrot.lane.b32.xlu0 %v1971, 64
    %v1974 = vpop.permute.xlu0 %1973
    %v1976 = vmul.f32 %v1958, %v1974
    %1978 = vrot.lane.b32.xlu0 %v1976, 32
    %v1979 = vpop.permute.xlu0 %1978
    %1981 = vst.msk [vmem:[#allocation4 + $0x30] sm:$0xff] %vm369, %v1979
    %v1982 = vld [vmem:[#allocation3 + $0x38] sm:$0xff]
    %v1983 = vld [vmem:[%s7] sm:$0xff]
    %v1984 = vld [vmem:[%s7 + $0x8] sm:$0xff]
    %v1985 = vld [vmem:[%s7 + $0x10] sm:$0xff]
    %v1986 = vld [vmem:[%s7 + $0x18] sm:$0xff]
    %v1987 = vsel %vm369, %v1979, 0
    %1989 = vmatprep.subr.mxu0 0.0
    %1990 = vmatpush1.msra.mxu0 %v1983
    %1991 = vmatprep.subr.mxu0 0.0
    %1992 = vmatpush1.msra.mxu0 %v1984
    %1993 = vmatprep.subr.mxu0 0.0
    %1994 = vmatpush1.msra.mxu0 %v1985
    %1995 = vmatprep.subr.mxu0 0.0
    %1996 = vmatpush1.msra.mxu0 %v1986
    %1997 = vmatprep.subr.mxu0 0.0
    %1998 = vmatpush1.msra.mxu0 0.0
    %1999 = vmatprep.subr.mxu0 0.0
    %2000 = vmatpush1.msra.mxu0 0.0
    %2001 = vmatprep.subr.mxu0 0.0
    %2002 = vmatpush1.msra.mxu0 0.0
    %2003 = vmatprep.subr.mxu0 0.0
    %2004 = vmatpush1.msra.mxu0 0.0
    %2005 = vmatprep.subr.mxu0 0.0
    %2006 = vmatpush1.msra.mxu0 0.0
    %2007 = vmatprep.subr.mxu0 0.0
    %2008 = vmatpush1.msra.mxu0 0.0
    %2009 = vmatprep.subr.mxu0 0.0
    %2010 = vmatpush1.msra.mxu0 0.0
    %2011 = vmatprep.subr.mxu0 0.0
    %2012 = vmatpush1.msra.mxu0 0.0
    %2013 = vmatprep.subr.mxu0 0.0
    %2014 = vmatpush1.msra.mxu0 0.0
    %2015 = vmatprep.subr.mxu0 0.0
    %2016 = vmatpush1.msra.mxu0 0.0
    %2017 = vmatprep.subr.mxu0 0.0
    %2018 = vmatpush1.msra.mxu0 0.0
    %2019 = vmatprep.subr.mxu0 0.0
    %2020 = vmatpush1.msra.mxu0 0.0
    %2021 = vmatprep.subr.mxu0 0.0
    %2022 = vmatpush1.msra.mxu0 0.0
    %2023 = vmatprep.subr.mxu0 0.0
    %2024 = vmatpush1.msra.mxu0 0.0
    %2025 = vmatprep.subr.mxu0 0.0
    %2026 = vmatpush1.msra.mxu0 0.0
    %2027 = vmatprep.subr.mxu0 0.0
    %2028 = vmatpush1.msra.mxu0 0.0
    %2029 = vmatprep.subr.mxu0 0.0
    %2030 = vmatpush1.msra.mxu0 0.0
    %2031 = vmatprep.subr.mxu0 0.0
    %2032 = vmatpush1.msra.mxu0 0.0
    %2033 = vmatprep.subr.mxu0 0.0
    %2034 = vmatpush1.msra.mxu0 0.0
    %2035 = vmatprep.subr.mxu0 0.0
    %2036 = vmatpush1.msra.mxu0 0.0
    %2037 = vmatprep.subr.mxu0 0.0
    %2038 = vmatpush1.msra.mxu0 0.0
    %2039 = vmatprep.subr.mxu0 0.0
    %2040 = vmatpush1.msra.mxu0 0.0
    %2041 = vmatprep.subr.mxu0 0.0
    %2042 = vmatpush1.msra.mxu0 0.0
    %2043 = vmatprep.subr.mxu0 0.0
    %2044 = vmatpush1.msra.mxu0 0.0
    %2045 = vmatprep.subr.mxu0 0.0
    %2046 = vmatpush1.msra.mxu0 0.0
    %2047 = vmatprep.subr.mxu0 0.0
    %2048 = vmatpush1.msra.mxu0 0.0
    %2049 = vmatprep.subr.mxu0 0.0
    %2050 = vmatpush1.msra.mxu0 0.0
    %2051 = vmatprep.subr.mxu0 0.0
    %2052 = vmatpush1.msra.mxu0 0.0
    %2053 = vmatprep.mubr.f32.mxu0 0.0
    %2054 = vmatmul.mubr.f32.gmra.mrb[0].mxu0 %v1987
    %v2055 = vpop.f32.mrb[0].mxu0
    %v2056 = vadd.f32 0.0, %v2055
    %v2057 = vpop.f32.mrb[0].mxu0
    %2058 = vdwg.mxu0
    %v2059 = vadd.f32 %v1982, %v2056
    %v2060 = vxor.u32 %v2059, 2147483648
    %v2061 = vmul.f32 %v2060, 1.442695
    %v2062 = vpow.pop %v2061
    %v2063 = vadd.f32 %v2062, 1.0
    %v2064 = vrcp.pop %v2063
    %v2065 = vmul.f32 1.0, %v2064
    %v2066 = vtanh.pop %v2059
    %v2067 = vmul.f32 %v2065, %v1970
    %2069 = vrot.lane.b32.xlu0 %v2066, 64
    %v2070 = vpop.permute.xlu0 %2069
    %v2072 = vmul.f32 %v2065, %v2070
    %2074 = vrot.lane.b32.xlu0 %v2072, 32
    %v2075 = vpop.permute.xlu0 %2074
    %v2077 = vadd.f32 %v2067, %v2075
    %v2078 = vtanh.pop %v2077
    %2080 = vrot.lane.b32.xlu0 %v2078, 64
    %v2081 = vpop.permute.xlu0 %2080
    %v2083 = vmul.f32 %v2065, %v2081
    %2085 = vrot.lane.b32.xlu0 %v2083, 32
    %v2086 = vpop.permute.xlu0 %2085
    %2088 = vst.msk [vmem:[#allocation4 + $0x38] sm:$0xff] %vm369, %v2086
    %v2089 = vld [vmem:[#allocation4] sm:$0xff]
    %v2090 = vld [vmem:[#allocation4 + $0x8] sm:$0xff]
    %v2091 = vld [vmem:[#allocation4 + $0x10] sm:$0xff]
    %v2092 = vld [vmem:[#allocation4 + $0x18] sm:$0xff]
    %v2093 = vld [vmem:[#allocation4 + $0x20] sm:$0xff]
    %v2094 = vld [vmem:[#allocation4 + $0x28] sm:$0xff]
    %v2095 = vld [vmem:[#allocation4 + $0x30] sm:$0xff]
    %v2096 = vld [vmem:[#allocation4 + $0x38] sm:$0xff]
    %v2097 = vld [vmem:[%s9] sm:$0xff]
    %v2098 = vld [vmem:[%s9 + $0x8] sm:$0xff]
    %v2099 = vld [vmem:[%s9 + $0x10] sm:$0xff]
    %v2100 = vld [vmem:[%s9 + $0x18] sm:$0xff]
    %v2101 = vld [vmem:[%s10] sm:$0x1]
    %v2103 = vlaneseq
    %v2104 = vshrl.u32 %v2103, 7
    %v2105 = vsub.s32 0, %v2104
    %v2106 = vrot.slane %v2101, %v2105
    %v2109 = vsel %vm369, %v2089, 0
    %v2112 = vsel %vm369, %v2090, 0
    %v2115 = vsel %vm369, %v2091, 0
    %v2118 = vsel %vm369, %v2092, 0
    %v2121 = vsel %vm369, %v2093, 0
    %v2124 = vsel %vm369, %v2094, 0
    %v2127 = vsel %vm369, %v2095, 0
    %v2130 = vsel %vm369, %v2096, 0
    %2132 = vmatprep.subr.mxu0 0.0
    %2133 = vmatpush1.msra.mxu0 %v2097
    %2134 = vmatprep.subr.mxu0 0.0
    %2135 = vmatpush1.msra.mxu0 %v2098
    %2136 = vmatprep.subr.mxu0 0.0
    %2137 = vmatpush1.msra.mxu0 %v2099
    %2138 = vmatprep.subr.mxu0 0.0
    %2139 = vmatpush1.msra.mxu0 %v2100
    %2140 = vmatprep.subr.mxu0 0.0
    %2141 = vmatpush1.msra.mxu0 0.0
    %2142 = vmatprep.subr.mxu0 0.0
    %2143 = vmatpush1.msra.mxu0 0.0
    %2144 = vmatprep.subr.mxu0 0.0
    %2145 = vmatpush1.msra.mxu0 0.0
    %2146 = vmatprep.subr.mxu0 0.0
    %2147 = vmatpush1.msra.mxu0 0.0
    %2148 = vmatprep.subr.mxu0 0.0
    %2149 = vmatpush1.msra.mxu0 0.0
    %2150 = vmatprep.subr.mxu0 0.0
    %2151 = vmatpush1.msra.mxu0 0.0
    %2152 = vmatprep.subr.mxu0 0.0
    %2153 = vmatpush1.msra.mxu0 0.0
    %2154 = vmatprep.subr.mxu0 0.0
    %2155 = vmatpush1.msra.mxu0 0.0
    %2156 = vmatprep.subr.mxu0 0.0
    %2157 = vmatpush1.msra.mxu0 0.0
    %2158 = vmatprep.subr.mxu0 0.0
    %2159 = vmatpush1.msra.mxu0 0.0
    %2160 = vmatprep.subr.mxu0 0.0
    %2161 = vmatpush1.msra.mxu0 0.0
    %2162 = vmatprep.subr.mxu0 0.0
    %2163 = vmatpush1.msra.mxu0 0.0
    %2164 = vmatprep.subr.mxu0 0.0
    %2165 = vmatpush1.msra.mxu0 0.0
    %2166 = vmatprep.subr.mxu0 0.0
    %2167 = vmatpush1.msra.mxu0 0.0
    %2168 = vmatprep.subr.mxu0 0.0
    %2169 = vmatpush1.msra.mxu0 0.0
    %2170 = vmatprep.subr.mxu0 0.0
    %2171 = vmatpush1.msra.mxu0 0.0
    %2172 = vmatprep.subr.mxu0 0.0
    %2173 = vmatpush1.msra.mxu0 0.0
    %2174 = vmatprep.subr.mxu0 0.0
    %2175 = vmatpush1.msra.mxu0 0.0
    %2176 = vmatprep.subr.mxu0 0.0
    %2177 = vmatpush1.msra.mxu0 0.0
    %2178 = vmatprep.subr.mxu0 0.0
    %2179 = vmatpush1.msra.mxu0 0.0
    %2180 = vmatprep.subr.mxu0 0.0
    %2181 = vmatpush1.msra.mxu0 0.0
    %2182 = vmatprep.subr.mxu0 0.0
    %2183 = vmatpush1.msra.mxu0 0.0
    %2184 = vmatprep.subr.mxu0 0.0
    %2185 = vmatpush1.msra.mxu0 0.0
    %2186 = vmatprep.subr.mxu0 0.0
    %2187 = vmatpush1.msra.mxu0 0.0
    %2188 = vmatprep.subr.mxu0 0.0
    %2189 = vmatpush1.msra.mxu0 0.0
    %2190 = vmatprep.subr.mxu0 0.0
    %2191 = vmatpush1.msra.mxu0 0.0
    %2192 = vmatprep.subr.mxu0 0.0
    %2193 = vmatpush1.msra.mxu0 0.0
    %2194 = vmatprep.subr.mxu0 0.0
    %2195 = vmatpush1.msra.mxu0 0.0
    %2196 = vmatprep.mubr.f32.mxu0 0.0
    %2197 = vmatmul.mubr.f32.gmra.mrb[0].mxu0 %v2109
    %v2198 = vpop.f32.mrb[0].mxu0
    %v2199 = vadd.f32 %v2106, %v2198
    %v2200 = vpop.f32.mrb[0].mxu0
    %2201 = vmatprep.mubr.f32.mxu0 0.0
    %2202 = vmatmul.mubr.f32.gmra.mrb[0].mxu0 %v2112
    %v2203 = vpop.f32.mrb[0].mxu0
    %v2204 = vadd.f32 %v2106, %v2203
    %v2205 = vpop.f32.mrb[0].mxu0
    %2206 = vmatprep.mubr.f32.mxu0 0.0
    %2207 = vmatmul.mubr.f32.gmra.mrb[0].mxu0 %v2115
    %v2208 = vpop.f32.mrb[0].mxu0
    %v2209 = vadd.f32 %v2106, %v2208
    %v2210 = vpop.f32.mrb[0].mxu0
    %2211 = vmatprep.mubr.f32.mxu0 0.0
    %2212 = vmatmul.mubr.f32.gmra.mrb[0].mxu0 %v2118
    %v2213 = vpop.f32.mrb[0].mxu0
    %v2214 = vadd.f32 %v2106, %v2213
    %v2215 = vpop.f32.mrb[0].mxu0
    %2216 = vmatprep.mubr.f32.mxu0 0.0
    %2217 = vmatmul.mubr.f32.gmra.mrb[0].mxu0 %v2121
    %v2218 = vpop.f32.mrb[0].mxu0
    %v2219 = vadd.f32 %v2106, %v2218
    %v2220 = vpop.f32.mrb[0].mxu0
    %2221 = vmatprep.mubr.f32.mxu0 0.0
    %2222 = vmatmul.mubr.f32.gmra.mrb[0].mxu0 %v2124
    %v2223 = vpop.f32.mrb[0].mxu0
    %v2224 = vadd.f32 %v2106, %v2223
    %v2225 = vpop.f32.mrb[0].mxu0
    %2226 = vmatprep.mubr.f32.mxu0 0.0
    %2227 = vmatmul.mubr.f32.gmra.mrb[0].mxu0 %v2127
    %v2228 = vpop.f32.mrb[0].mxu0
    %v2229 = vadd.f32 %v2106, %v2228
    %v2230 = vpop.f32.mrb[0].mxu0
    %2231 = vmatprep.mubr.f32.mxu0 0.0
    %2232 = vmatmul.mubr.f32.gmra.mrb[0].mxu0 %v2130
    %v2233 = vpop.f32.mrb[0].mxu0
    %v2234 = vadd.f32 %v2106, %v2233
    %v2235 = vpop.f32.mrb[0].mxu0
    %2236 = vdwg.mxu0
    %2237 = vst [vmem:[#allocation5] sm:$0xff] %v2199
    %2238 = vst [vmem:[#allocation5 + $0x8] sm:$0xff] %v2204
    %2239 = vst [vmem:[#allocation5 + $0x10] sm:$0xff] %v2209
    %2240 = vst [vmem:[#allocation5 + $0x18] sm:$0xff] %v2214
    %2241 = vst [vmem:[#allocation5 + $0x20] sm:$0xff] %v2219
    %2242 = vst [vmem:[#allocation5 + $0x28] sm:$0xff] %v2224
    %2243 = vst [vmem:[#allocation5 + $0x30] sm:$0xff] %v2229
    %2244 = vst [vmem:[#allocation5 + $0x38] sm:$0xff] %v2234
    // Predicated region
    $region46: #{tpu_custom_call.1} parent=1 // pred_check
      _
    $region47: #{tpu_custom_call.1} parent=1 // pred_check_branch
      %2246 = sbr.rel (0) target = $region49
    $region48: #{tpu_custom_call.1} parent=1 // pred_region
      %s2248 = ssub.s32 1024, 1024
      %2249 = vsyncadd [#allocation6], %s2248
      %s2250 = sshll.u32 [#allocation5], 4
      %s2251 = int_to_ptr.vmem [resolvable:$true] %s2250
      %2256 = dma.vmem_to_hbm [thread:$0]  %s2251, 1024, %s11, [#allocation6], 128, 128, 8
    $region49: #{tpu_custom_call.1} parent=1 // pred_fallthru
      _
    // Predicated region
    $region50: #{tpu_custom_call.1} parent=1 // pred_check
      _
    $region51: #{tpu_custom_call.1} parent=1 // pred_check_branch
      %2258 = sbr.rel (0) target = $region53
    $region52: #{tpu_custom_call.1} parent=1 // pred_region
      %2259 = dma.done [#allocation6], 1024
    $region53: #{tpu_custom_call.1} parent=1 // pred_fallthru
      _
    %2260 = vsyncpa [#allocation6], 1

</llo_original>
